<compile_context>
chip_gen: v7x
topology: tpu7x:2x2x1
jax: 0.10.0
libtpu: 0.0.40
codegen_flags: <defaults>
</compile_context>

<pallas_src>
import jax
import jax.numpy as jnp
from jax.experimental import pallas as pl
from jax.experimental.pallas import tpu as pltpu  # noqa: F401  (kept per template)


# ----------------------------- config (small) --------------------------------
B = 2            # batch
S = 8            # sequence length
H = 32           # hidden size
F = 64           # FFN intermediate size
V = 50           # vocab size
V_PAD = 56       # vocab rows padded to a multiple of 8 (sublane-aligned slice)
NUM_CLASSES = 7
LN_EPS = 1e-12
LANE = 128       # lane width for padded packing

# packed-weight slab row offsets (all multiples of 8 -> sublane-aligned slices)
R_WQ = 0
R_WK = H
R_WV = 2 * H
R_WO = 3 * H
R_W1 = 4 * H
R_W2 = 5 * H
R_WC = 5 * H + F
R_WE = 6 * H + F                 # word-embedding table (V_PAD rows)
W_ROWS = 6 * H + F + V_PAD       # 312

# packed bias / LN / pos-emb slab rows
ROW_BQ, ROW_BK, ROW_BV, ROW_BO = 0, 1, 2, 3
ROW_B1, ROW_B2, ROW_BC = 4, 5, 6
ROW_LNE_G, ROW_LNE_B = 7, 8
ROW_LN1_G, ROW_LN1_B = 9, 10
ROW_LN2_G, ROW_LN2_B = 11, 12
ROW_POS = 16                     # tiled pos+type embeddings, rows [16, 16+B*S)


# ------------------------------- kernel --------------------------------------
def _layernorm(x, gamma, beta, eps=LN_EPS):
    mu = jnp.mean(x, axis=-1, keepdims=True)
    var = jnp.mean(jnp.square(x - mu), axis=-1, keepdims=True)
    return (x - mu) * jax.lax.rsqrt(var + eps) * gamma + beta


def single_task_kernel(ids_ref, mask_ref, w_ref, b_ref, out_ref):
    # ids_ref : (B*S, 1)  int32  flattened token ids
    # mask_ref: (1, B*S)  int32  flattened attention mask (1 = valid key)
    # w_ref   : (W_ROWS, 128) f32 packed weights + padded word-embedding table
    # b_ref   : (16 + B*S, 128) f32 packed biases / LN params / tiled pos+type emb
    # out_ref : (B, 128)  f32 lane-padded classify logits
    bs = ids_ref.shape[0]
    nb = out_ref.shape[0]
    seq = bs // nb

    # ---- unpack packed slabs (static, sublane-aligned row slices, lane 0) ----
    wq = w_ref[R_WQ:R_WQ + H, 0:H]            # 1/sqrt(H) folded in at pack time
    wk = w_ref[R_WK:R_WK + H, 0:H]
    wv = w_ref[R_WV:R_WV + H, 0:H]
    wo = w_ref[R_WO:R_WO + H, 0:H]
    w1 = w_ref[R_W1:R_W1 + H, 0:F]
    w2 = w_ref[R_W2:R_W2 + F, 0:H]
    wc = w_ref[R_WC:R_WC + H, :]              # (H, 128) lane-padded classifier
    wemb = w_ref[R_WE:R_WE + V_PAD, 0:H]      # (V_PAD, H) word-embedding table

    bq = b_ref[ROW_BQ:ROW_BQ + 1, 0:H]
    bk = b_ref[ROW_BK:ROW_BK + 1, 0:H]
    bv = b_ref[ROW_BV:ROW_BV + 1, 0:H]
    bo = b_ref[ROW_BO:ROW_BO + 1, 0:H]
    b1 = b_ref[ROW_B1:ROW_B1 + 1, 0:F]
    b2 = b_ref[ROW_B2:ROW_B2 + 1, 0:H]
    bc = b_ref[ROW_BC:ROW_BC + 1, :]          # (1, 128) lane-padded
    ln_e_g = b_ref[ROW_LNE_G:ROW_LNE_G + 1, 0:H]
    ln_e_b = b_ref[ROW_LNE_B:ROW_LNE_B + 1, 0:H]
    ln1_g = b_ref[ROW_LN1_G:ROW_LN1_G + 1, 0:H]
    ln1_b = b_ref[ROW_LN1_B:ROW_LN1_B + 1, 0:H]
    ln2_g = b_ref[ROW_LN2_G:ROW_LN2_G + 1, 0:H]
    ln2_b = b_ref[ROW_LN2_B:ROW_LN2_B + 1, 0:H]
    pos_type = b_ref[ROW_POS:ROW_POS + bs, 0:H]     # (B*S, H) tiled pos+type emb

    # ---- embedding lookup fused in-kernel: one-hot @ table (one MXU push) ----
    ids = ids_ref[...]                                               # (BS, 1)
    vocab_iota = jax.lax.broadcasted_iota(jnp.int32, (bs, V_PAD), 1)
    onehot = (vocab_iota == ids).astype(jnp.float32)                 # (BS, V_PAD)
    x = jnp.dot(onehot, wemb, preferred_element_type=jnp.float32)    # (BS, H)
    x = x + pos_type

    h0 = _layernorm(x, ln_e_g, ln_e_b)

    # ---- self-attention (single head, head_dim = H), batch-flattened ----
    q = jnp.dot(h0, wq, preferred_element_type=jnp.float32) + bq
    k = jnp.dot(h0, wk, preferred_element_type=jnp.float32) + bk
    v = jnp.dot(h0, wv, preferred_element_type=jnp.float32) + bv

    scores = jax.lax.dot_general(q, k, (((1,), (1,)), ((), ())),
                                 preferred_element_type=jnp.float32)  # (BS, BS)

    # Block-diagonal (per-sample) + key-padding mask, computed on the VPU from
    # 2-D iotas and the int attention mask.
    if seq & (seq - 1) == 0:
        shift = seq.bit_length() - 1
        q_batch = jax.lax.broadcasted_iota(jnp.int32, (bs, bs), 0) >> shift
        k_batch = jax.lax.broadcasted_iota(jnp.int32, (bs, bs), 1) >> shift
    else:
        q_batch = jax.lax.broadcasted_iota(jnp.int32, (bs, bs), 0) // seq
        k_batch = jax.lax.broadcasted_iota(jnp.int32, (bs, bs), 1) // seq
    valid = (q_batch == k_batch) & (mask_ref[...] > 0)                # (BS, BS)
    scores = jnp.where(valid, scores, jnp.float32(-1e9))

    scores = scores - jnp.max(scores, axis=-1, keepdims=True)
    p = jnp.exp(scores)
    attn = p * pl.reciprocal(jnp.sum(p, axis=-1, keepdims=True), approx=True)

    ctx = jnp.dot(attn, v, preferred_element_type=jnp.float32)        # (BS, H)
    attn_out = jnp.dot(ctx, wo, preferred_element_type=jnp.float32) + bo
    h1 = _layernorm(h0 + attn_out, ln1_g, ln1_b)

    # ---- feed-forward ----
    ff = jnp.dot(h1, w1, preferred_element_type=jnp.float32) + b1
    # TODO(synk): PyTorch nn.GELU default is the exact erf GELU; the tanh
    # approximation is kept for guaranteed EUP lowering (tiny numerical delta).
    ff = jax.nn.gelu(ff, approximate=True)
    ff = jnp.dot(ff, w2, preferred_element_type=jnp.float32) + b2
    h2 = _layernorm(h1 + ff, ln2_g, ln2_b)        # flattened last_hidden_state

    # ---- classify head (lane-dense), then pick the CLS row of each sample ----
    logits_all = jnp.dot(h2, wc, preferred_element_type=jnp.float32) + bc  # (BS, 128)
    for b in range(nb):
        out_ref[b:b + 1, :] = logits_all[b * seq:b * seq + 1, :]


# ------------------------------- wrapper --------------------------------------
@jax.jit
def single_task_forward(input_ids, attention_mask, packed):
    bsz, seq = input_ids.shape
    # Only tiny int32 reshapes remain outside the kernel (contiguous, metadata
    # only); embedding gather, pos/type add and mask arithmetic are in-kernel.
    ids_col = input_ids.reshape(bsz * seq, 1).astype(jnp.int32)
    mask_row = attention_mask.reshape(1, bsz * seq).astype(jnp.int32)

    # Single kernel invocation (no grid): every operand is a full-array VMEM
    # block (~180 KiB total), weights DMA'd exactly once.
    out = pl.pallas_call(
        single_task_kernel,
        out_shape=jax.ShapeDtypeStruct((bsz, LANE), jnp.float32),
    )(ids_col, mask_row, packed["w_pack"], packed["b_pack"])

    return out[:, :NUM_CLASSES]                    # (B, 7)


# ----------------------- parameter init & packing ------------------------------
def init_params(key):
    ks = jax.random.split(key, 16)
    s = 0.02

    def nrm(k, shape):
        return (s * jax.random.normal(k, shape)).astype(jnp.float32)

    return {
        # embeddings
        "word_emb": nrm(ks[0], (V, H)),
        "pos_emb": nrm(ks[1], (S, H)),
        "type_emb": nrm(ks[2], (2, H)),
        "ln_e_g": jnp.ones((1, H), jnp.float32),
        "ln_e_b": jnp.zeros((1, H), jnp.float32),
        # attention (single head, head_dim = H); weights stored (in, out)
        "wq": nrm(ks[3], (H, H)), "bq": jnp.zeros((1, H), jnp.float32),
        "wk": nrm(ks[4], (H, H)), "bk": jnp.zeros((1, H), jnp.float32),
        "wv": nrm(ks[5], (H, H)), "bv": jnp.zeros((1, H), jnp.float32),
        "wo": nrm(ks[6], (H, H)), "bo": jnp.zeros((1, H), jnp.float32),
        "ln1_g": jnp.ones((1, H), jnp.float32),
        "ln1_b": jnp.zeros((1, H), jnp.float32),
        # FFN
        "w1": nrm(ks[7], (H, F)), "b1": jnp.zeros((1, F), jnp.float32),
        "w2": nrm(ks[8], (F, H)), "b2": jnp.zeros((1, H), jnp.float32),
        "ln2_g": jnp.ones((1, H), jnp.float32),
        "ln2_b": jnp.zeros((1, H), jnp.float32),
        # classify head (nn.Linear(hidden_size, 7)), stored as (in, out)
        "wc": nrm(ks[9], (H, NUM_CLASSES)),
        "bc": jnp.zeros((1, NUM_CLASSES), jnp.float32),
    }


def pack_params(params, batch):
    """Fold the 1/sqrt(H) attention scale into wq/bq, pre-add & tile pos/type
    embeddings, and pack everything (incl. the padded word-embedding table)
    into two lane-padded slabs.  Done once, outside the per-call hot path."""
    def pad_lanes(a, width=LANE):
        return jnp.pad(a, ((0, 0), (0, width - a.shape[1])))

    scale = jnp.float32(1.0 / jnp.sqrt(jnp.float32(H)))
    wq = params["wq"] * scale
    bq = params["bq"] * scale
    wemb = jnp.pad(params["word_emb"], ((0, V_PAD - V), (0, 0)))      # (V_PAD, H)

    w_pack = jnp.concatenate([
        pad_lanes(wq),             # rows [0,   H)
        pad_lanes(params["wk"]),   # rows [H,  2H)
        pad_lanes(params["wv"]),   # rows [2H, 3H)
        pad_lanes(params["wo"]),   # rows [3H, 4H)
        pad_lanes(params["w1"]),   # rows [4H, 5H)
        pad_lanes(params["w2"]),   # rows [5H, 5H+F)
        pad_lanes(params["wc"]),   # rows [5H+F, 6H+F)
        pad_lanes(wemb),           # rows [6H+F, 6H+F+V_PAD)
    ], axis=0).astype(jnp.float32)                                     # (312, 128)
    assert w_pack.shape == (W_ROWS, LANE)

    # pos + token-type(0) embeddings, tiled to the flattened (B*S, H) layout
    pos_type = jnp.tile(params["pos_emb"] + params["type_emb"][0][None, :],
                        (batch, 1))                                    # (B*S, H)

    b_rows = [
        pad_lanes(bq), pad_lanes(params["bk"]), pad_lanes(params["bv"]),
        pad_lanes(params["bo"]), pad_lanes(params["b1"]), pad_lanes(params["b2"]),
        pad_lanes(params["bc"]),
        pad_lanes(params["ln_e_g"]), pad_lanes(params["ln_e_b"]),
        pad_lanes(params["ln1_g"]), pad_lanes(params["ln1_b"]),
        pad_lanes(params["ln2_g"]), pad_lanes(params["ln2_b"]),
    ]
    pad = jnp.zeros((ROW_POS - len(b_rows), LANE), jnp.float32)
    b_pack = jnp.concatenate(
        b_rows + [pad, pad_lanes(pos_type)], axis=0
    ).astype(jnp.float32)                                              # (32, 128)
    assert b_pack.shape == (ROW_POS + batch * S, LANE)

    return {"w_pack": w_pack, "b_pack": b_pack}


# --------------------------------- main ----------------------------------------
if __name__ == "__main__":
    key = jax.random.PRNGKey(0)
    pkey, ikey = jax.random.split(key)
    params = init_params(pkey)
    packed = pack_params(params, batch=B)

    input_ids = jax.random.randint(ikey, (B, S), minval=0, maxval=V, dtype=jnp.int32)
    # sample 2 has 2 padded positions at the end
    lengths = jnp.array([S, S - 2], dtype=jnp.int32)
    attention_mask = (jnp.arange(S)[None, :] < lengths[:, None]).astype(jnp.int32)

    logits = single_task_forward(input_ids, attention_mask, packed)
    logits = jax.block_until_ready(logits)

    assert logits.shape == (B, NUM_CLASSES), logits.shape
    assert logits.dtype == jnp.float32
    assert bool(jnp.all(jnp.isfinite(logits)))
    print("KERNEL_OK")
</pallas_src>

<mosaic_0001>
module attributes {stable_mosaic.version = 11 : i64} {
  func.func @single_task_kernel(%arg0: memref<16x1xi32, #tpu.memory_space<vmem>>, %arg1: memref<1x16xi32, #tpu.memory_space<vmem>>, %arg2: memref<312x128xf32, #tpu.memory_space<vmem>>, %arg3: memref<32x128xf32, #tpu.memory_space<vmem>>, %arg4: memref<2x128xf32, #tpu.memory_space<vmem>>) attributes {dimension_semantics = [], scalar_prefetch = 0 : i64, scratch_operands = 0 : i64, tpu.core_type = #tpu.core_type<tc>} {
    %c0 = arith.constant 0 : index
    %c0_0 = arith.constant 0 : index
    %0 = vector.load %arg2[%c0, %c0_0] : memref<312x128xf32, #tpu.memory_space<vmem>>, vector<32x32xf32>
    %c32 = arith.constant 32 : index
    %c0_1 = arith.constant 0 : index
    %1 = vector.load %arg2[%c32, %c0_1] : memref<312x128xf32, #tpu.memory_space<vmem>>, vector<32x32xf32>
    %c64 = arith.constant 64 : index
    %c0_2 = arith.constant 0 : index
    %2 = vector.load %arg2[%c64, %c0_2] : memref<312x128xf32, #tpu.memory_space<vmem>>, vector<32x32xf32>
    %c96 = arith.constant 96 : index
    %c0_3 = arith.constant 0 : index
    %3 = vector.load %arg2[%c96, %c0_3] : memref<312x128xf32, #tpu.memory_space<vmem>>, vector<32x32xf32>
    %c128 = arith.constant 128 : index
    %c0_4 = arith.constant 0 : index
    %4 = vector.load %arg2[%c128, %c0_4] : memref<312x128xf32, #tpu.memory_space<vmem>>, vector<32x64xf32>
    %c160 = arith.constant 160 : index
    %c0_5 = arith.constant 0 : index
    %5 = vector.load %arg2[%c160, %c0_5] : memref<312x128xf32, #tpu.memory_space<vmem>>, vector<64x32xf32>
    %c224 = arith.constant 224 : index
    %c0_6 = arith.constant 0 : index
    %6 = vector.load %arg2[%c224, %c0_6] : memref<312x128xf32, #tpu.memory_space<vmem>>, vector<32x128xf32>
    %c256 = arith.constant 256 : index
    %c0_7 = arith.constant 0 : index
    %7 = vector.load %arg2[%c256, %c0_7] : memref<312x128xf32, #tpu.memory_space<vmem>>, vector<56x32xf32>
    %c0_8 = arith.constant 0 : index
    %c0_9 = arith.constant 0 : index
    %8 = vector.load %arg3[%c0_8, %c0_9] : memref<32x128xf32, #tpu.memory_space<vmem>>, vector<1x32xf32>
    %c1 = arith.constant 1 : index
    %c0_10 = arith.constant 0 : index
    %9 = vector.load %arg3[%c1, %c0_10] : memref<32x128xf32, #tpu.memory_space<vmem>>, vector<1x32xf32>
    %c2 = arith.constant 2 : index
    %c0_11 = arith.constant 0 : index
    %10 = vector.load %arg3[%c2, %c0_11] : memref<32x128xf32, #tpu.memory_space<vmem>>, vector<1x32xf32>
    %c3 = arith.constant 3 : index
    %c0_12 = arith.constant 0 : index
    %11 = vector.load %arg3[%c3, %c0_12] : memref<32x128xf32, #tpu.memory_space<vmem>>, vector<1x32xf32>
    %c4 = arith.constant 4 : index
    %c0_13 = arith.constant 0 : index
    %12 = vector.load %arg3[%c4, %c0_13] : memref<32x128xf32, #tpu.memory_space<vmem>>, vector<1x64xf32>
    %c5 = arith.constant 5 : index
    %c0_14 = arith.constant 0 : index
    %13 = vector.load %arg3[%c5, %c0_14] : memref<32x128xf32, #tpu.memory_space<vmem>>, vector<1x32xf32>
    %c6 = arith.constant 6 : index
    %c0_15 = arith.constant 0 : index
    %14 = vector.load %arg3[%c6, %c0_15] : memref<32x128xf32, #tpu.memory_space<vmem>>, vector<1x128xf32>
    %c7 = arith.constant 7 : index
    %c0_16 = arith.constant 0 : index
    %15 = vector.load %arg3[%c7, %c0_16] : memref<32x128xf32, #tpu.memory_space<vmem>>, vector<1x32xf32>
    %c8 = arith.constant 8 : index
    %c0_17 = arith.constant 0 : index
    %16 = vector.load %arg3[%c8, %c0_17] : memref<32x128xf32, #tpu.memory_space<vmem>>, vector<1x32xf32>
    %c9 = arith.constant 9 : index
    %c0_18 = arith.constant 0 : index
    %17 = vector.load %arg3[%c9, %c0_18] : memref<32x128xf32, #tpu.memory_space<vmem>>, vector<1x32xf32>
    %c10 = arith.constant 10 : index
    %c0_19 = arith.constant 0 : index
    %18 = vector.load %arg3[%c10, %c0_19] : memref<32x128xf32, #tpu.memory_space<vmem>>, vector<1x32xf32>
    %c11 = arith.constant 11 : index
    %c0_20 = arith.constant 0 : index
    %19 = vector.load %arg3[%c11, %c0_20] : memref<32x128xf32, #tpu.memory_space<vmem>>, vector<1x32xf32>
    %c12 = arith.constant 12 : index
    %c0_21 = arith.constant 0 : index
    %20 = vector.load %arg3[%c12, %c0_21] : memref<32x128xf32, #tpu.memory_space<vmem>>, vector<1x32xf32>
    %c16 = arith.constant 16 : index
    %c0_22 = arith.constant 0 : index
    %21 = vector.load %arg3[%c16, %c0_22] : memref<32x128xf32, #tpu.memory_space<vmem>>, vector<16x32xf32>
    %c0_23 = arith.constant 0 : index
    %c0_24 = arith.constant 0 : index
    %22 = vector.load %arg0[%c0_23, %c0_24] : memref<16x1xi32, #tpu.memory_space<vmem>>, vector<16x1xi32>
    %23 = tpu.iota {dimensions = array<i32: 1>} : vector<16x56xi32>
    %24 = vector.broadcast %22 : vector<16x1xi32> to vector<16x56xi32>
    %25 = arith.cmpi eq, %23, %24 : vector<16x56xi32>
    %26 = arith.extui %25 : vector<16x56xi1> to vector<16x56xi32>
    %27 = arith.sitofp %26 : vector<16x56xi32> to vector<16x56xf32>
    %cst = arith.constant dense<0.000000e+00> : vector<16x32xf32>
    %28 = tpu.matmul %27, %7, %cst {dimension_numbers = #tpu.dot_dimension_numbers<[1], [0], [0], [1], [0, 0, 1, 1], [], []>} : vector<16x56xf32>, vector<56x32xf32>, vector<16x32xf32> -> vector<16x32xf32>
    %29 = arith.addf %28, %21 : vector<16x32xf32>
    %cst_25 = arith.constant dense<0.000000e+00> : vector<16xf32>
    %30 = vector.multi_reduction <add>, %29, %cst_25 [1] : vector<16x32xf32> to vector<16xf32>
    %31 = vector.shape_cast %30 : vector<16xf32> to vector<16x1xf32>
    %cst_26 = arith.constant 3.200000e+01 : f32
    %32 = vector.broadcast %cst_26 : f32 to vector<16x1xf32>
    %33 = arith.divf %31, %32 : vector<16x1xf32>
    %34 = vector.broadcast %33 : vector<16x1xf32> to vector<16x32xf32>
    %35 = arith.subf %29, %34 : vector<16x32xf32>
    %36 = arith.mulf %35, %35 : vector<16x32xf32>
    %cst_27 = arith.constant dense<0.000000e+00> : vector<16xf32>
    %37 = vector.multi_reduction <add>, %36, %cst_27 [1] : vector<16x32xf32> to vector<16xf32>
    %38 = vector.shape_cast %37 : vector<16xf32> to vector<16x1xf32>
    %cst_28 = arith.constant 3.200000e+01 : f32
    %39 = vector.broadcast %cst_28 : f32 to vector<16x1xf32>
    %40 = arith.divf %38, %39 : vector<16x1xf32>
    %41 = vector.broadcast %33 : vector<16x1xf32> to vector<16x32xf32>
    %42 = arith.subf %29, %41 : vector<16x32xf32>
    %cst_29 = arith.constant 9.99999996E-13 : f32
    %43 = vector.broadcast %cst_29 : f32 to vector<16x1xf32>
    %44 = arith.addf %40, %43 : vector<16x1xf32>
    %45 = math.rsqrt %44 : vector<16x1xf32>
    %46 = vector.broadcast %45 : vector<16x1xf32> to vector<16x32xf32>
    %47 = arith.mulf %42, %46 : vector<16x32xf32>
    %48 = vector.broadcast %15 : vector<1x32xf32> to vector<16x32xf32>
    %49 = arith.mulf %47, %48 : vector<16x32xf32>
    %50 = vector.broadcast %16 : vector<1x32xf32> to vector<16x32xf32>
    %51 = arith.addf %49, %50 : vector<16x32xf32>
    %cst_30 = arith.constant dense<0.000000e+00> : vector<16x32xf32>
    %52 = tpu.matmul %51, %0, %cst_30 {dimension_numbers = #tpu.dot_dimension_numbers<[1], [0], [0], [1], [0, 0, 1, 1], [], []>} : vector<16x32xf32>, vector<32x32xf32>, vector<16x32xf32> -> vector<16x32xf32>
    %53 = vector.broadcast %8 : vector<1x32xf32> to vector<16x32xf32>
    %54 = arith.addf %52, %53 : vector<16x32xf32>
    %cst_31 = arith.constant dense<0.000000e+00> : vector<16x32xf32>
    %55 = tpu.matmul %51, %1, %cst_31 {dimension_numbers = #tpu.dot_dimension_numbers<[1], [0], [0], [1], [0, 0, 1, 1], [], []>} : vector<16x32xf32>, vector<32x32xf32>, vector<16x32xf32> -> vector<16x32xf32>
    %56 = vector.broadcast %9 : vector<1x32xf32> to vector<16x32xf32>
    %57 = arith.addf %55, %56 : vector<16x32xf32>
    %cst_32 = arith.constant dense<0.000000e+00> : vector<16x32xf32>
    %58 = tpu.matmul %51, %2, %cst_32 {dimension_numbers = #tpu.dot_dimension_numbers<[1], [0], [0], [1], [0, 0, 1, 1], [], []>} : vector<16x32xf32>, vector<32x32xf32>, vector<16x32xf32> -> vector<16x32xf32>
    %59 = vector.broadcast %10 : vector<1x32xf32> to vector<16x32xf32>
    %60 = arith.addf %58, %59 : vector<16x32xf32>
    %cst_33 = arith.constant dense<0.000000e+00> : vector<16x16xf32>
    %61 = tpu.matmul %54, %57, %cst_33 {dimension_numbers = #tpu.dot_dimension_numbers<[1], [1], [0], [0], [0, 0, 1, 0], [], []>} : vector<16x32xf32>, vector<16x32xf32>, vector<16x16xf32> -> vector<16x16xf32>
    %62 = tpu.iota {dimensions = array<i32: 0>} : vector<16x16xi32>
    %c3_i32 = arith.constant 3 : i32
    %63 = vector.broadcast %c3_i32 : i32 to vector<16x16xi32>
    %64 = arith.shrsi %62, %63 : vector<16x16xi32>
    %65 = tpu.iota {dimensions = array<i32: 1>} : vector<16x16xi32>
    %c3_i32_34 = arith.constant 3 : i32
    %66 = vector.broadcast %c3_i32_34 : i32 to vector<16x16xi32>
    %67 = arith.shrsi %65, %66 : vector<16x16xi32>
    %68 = arith.cmpi eq, %64, %67 : vector<16x16xi32>
    %c0_35 = arith.constant 0 : index
    %c0_36 = arith.constant 0 : index
    %69 = vector.load %arg1[%c0_35, %c0_36] : memref<1x16xi32, #tpu.memory_space<vmem>>, vector<1x16xi32>
    %c0_i32 = arith.constant 0 : i32
    %70 = vector.broadcast %c0_i32 : i32 to vector<1x16xi32>
    %71 = arith.cmpi sgt, %69, %70 : vector<1x16xi32>
    %72 = vector.broadcast %71 : vector<1x16xi1> to vector<16x16xi1>
    %73 = arith.andi %68, %72 : vector<16x16xi1>
    %cst_37 = arith.constant -1.000000e+09 : f32
    %74 = vector.broadcast %cst_37 : f32 to vector<16x16xf32>
    %75 = arith.select %73, %61, %74 : vector<16x16xi1>, vector<16x16xf32>
    %cst_38 = arith.constant dense<0xFF800000> : vector<16xf32>
    %76 = vector.multi_reduction <maximumf>, %75, %cst_38 [1] : vector<16x16xf32> to vector<16xf32>
    %77 = vector.shape_cast %76 : vector<16xf32> to vector<16x1xf32>
    %78 = vector.broadcast %77 : vector<16x1xf32> to vector<16x16xf32>
    %79 = arith.subf %75, %78 : vector<16x16xf32>
    %80 = math.exp %79 : vector<16x16xf32>
    %cst_39 = arith.constant dense<0.000000e+00> : vector<16xf32>
    %81 = vector.multi_reduction <add>, %80, %cst_39 [1] : vector<16x16xf32> to vector<16xf32>
    %82 = vector.shape_cast %81 : vector<16xf32> to vector<16x1xf32>
    %83 = tpu.reciprocal %82 {approx = true} : vector<16x1xf32> -> vector<16x1xf32>
    %84 = vector.broadcast %83 : vector<16x1xf32> to vector<16x16xf32>
    %85 = arith.mulf %80, %84 : vector<16x16xf32>
    %cst_40 = arith.constant dense<0.000000e+00> : vector<16x32xf32>
    %86 = tpu.matmul %85, %60, %cst_40 {dimension_numbers = #tpu.dot_dimension_numbers<[1], [0], [0], [1], [0, 0, 1, 1], [], []>} : vector<16x16xf32>, vector<16x32xf32>, vector<16x32xf32> -> vector<16x32xf32>
    %cst_41 = arith.constant dense<0.000000e+00> : vector<16x32xf32>
    %87 = tpu.matmul %86, %3, %cst_41 {dimension_numbers = #tpu.dot_dimension_numbers<[1], [0], [0], [1], [0, 0, 1, 1], [], []>} : vector<16x32xf32>, vector<32x32xf32>, vector<16x32xf32> -> vector<16x32xf32>
    %88 = vector.broadcast %11 : vector<1x32xf32> to vector<16x32xf32>
    %89 = arith.addf %87, %88 : vector<16x32xf32>
    %90 = arith.addf %51, %89 : vector<16x32xf32>
    %cst_42 = arith.constant dense<0.000000e+00> : vector<16xf32>
    %91 = vector.multi_reduction <add>, %90, %cst_42 [1] : vector<16x32xf32> to vector<16xf32>
    %92 = vector.shape_cast %91 : vector<16xf32> to vector<16x1xf32>
    %cst_43 = arith.constant 3.200000e+01 : f32
    %93 = vector.broadcast %cst_43 : f32 to vector<16x1xf32>
    %94 = arith.divf %92, %93 : vector<16x1xf32>
    %95 = vector.broadcast %94 : vector<16x1xf32> to vector<16x32xf32>
    %96 = arith.subf %90, %95 : vector<16x32xf32>
    %97 = arith.mulf %96, %96 : vector<16x32xf32>
    %cst_44 = arith.constant dense<0.000000e+00> : vector<16xf32>
    %98 = vector.multi_reduction <add>, %97, %cst_44 [1] : vector<16x32xf32> to vector<16xf32>
    %99 = vector.shape_cast %98 : vector<16xf32> to vector<16x1xf32>
    %cst_45 = arith.constant 3.200000e+01 : f32
    %100 = vector.broadcast %cst_45 : f32 to vector<16x1xf32>
    %101 = arith.divf %99, %100 : vector<16x1xf32>
    %102 = vector.broadcast %94 : vector<16x1xf32> to vector<16x32xf32>
    %103 = arith.subf %90, %102 : vector<16x32xf32>
    %cst_46 = arith.constant 9.99999996E-13 : f32
    %104 = vector.broadcast %cst_46 : f32 to vector<16x1xf32>
    %105 = arith.addf %101, %104 : vector<16x1xf32>
    %106 = math.rsqrt %105 : vector<16x1xf32>
    %107 = vector.broadcast %106 : vector<16x1xf32> to vector<16x32xf32>
    %108 = arith.mulf %103, %107 : vector<16x32xf32>
    %109 = vector.broadcast %17 : vector<1x32xf32> to vector<16x32xf32>
    %110 = arith.mulf %108, %109 : vector<16x32xf32>
    %111 = vector.broadcast %18 : vector<1x32xf32> to vector<16x32xf32>
    %112 = arith.addf %110, %111 : vector<16x32xf32>
    %cst_47 = arith.constant dense<0.000000e+00> : vector<16x64xf32>
    %113 = tpu.matmul %112, %4, %cst_47 {dimension_numbers = #tpu.dot_dimension_numbers<[1], [0], [0], [1], [0, 0, 1, 1], [], []>} : vector<16x32xf32>, vector<32x64xf32>, vector<16x64xf32> -> vector<16x64xf32>
    %114 = vector.broadcast %12 : vector<1x64xf32> to vector<16x64xf32>
    %115 = arith.addf %113, %114 : vector<16x64xf32>
    %116 = arith.mulf %115, %115 : vector<16x64xf32>
    %117 = arith.mulf %115, %116 : vector<16x64xf32>
    %cst_48 = arith.constant 4.471500e-02 : f32
    %118 = vector.broadcast %cst_48 : f32 to vector<16x64xf32>
    %119 = arith.mulf %118, %117 : vector<16x64xf32>
    %120 = arith.addf %115, %119 : vector<16x64xf32>
    %cst_49 = arith.constant 0.797884583 : f32
    %121 = vector.broadcast %cst_49 : f32 to vector<16x64xf32>
    %122 = arith.mulf %121, %120 : vector<16x64xf32>
    %123 = math.tanh %122 : vector<16x64xf32>
    %cst_50 = arith.constant 1.000000e+00 : f32
    %124 = vector.broadcast %cst_50 : f32 to vector<16x64xf32>
    %125 = arith.addf %124, %123 : vector<16x64xf32>
    %cst_51 = arith.constant 5.000000e-01 : f32
    %126 = vector.broadcast %cst_51 : f32 to vector<16x64xf32>
    %127 = arith.mulf %126, %125 : vector<16x64xf32>
    %128 = arith.mulf %115, %127 : vector<16x64xf32>
    %cst_52 = arith.constant dense<0.000000e+00> : vector<16x32xf32>
    %129 = tpu.matmul %128, %5, %cst_52 {dimension_numbers = #tpu.dot_dimension_numbers<[1], [0], [0], [1], [0, 0, 1, 1], [], []>} : vector<16x64xf32>, vector<64x32xf32>, vector<16x32xf32> -> vector<16x32xf32>
    %130 = vector.broadcast %13 : vector<1x32xf32> to vector<16x32xf32>
    %131 = arith.addf %129, %130 : vector<16x32xf32>
    %132 = arith.addf %112, %131 : vector<16x32xf32>
    %cst_53 = arith.constant dense<0.000000e+00> : vector<16xf32>
    %133 = vector.multi_reduction <add>, %132, %cst_53 [1] : vector<16x32xf32> to vector<16xf32>
    %134 = vector.shape_cast %133 : vector<16xf32> to vector<16x1xf32>
    %cst_54 = arith.constant 3.200000e+01 : f32
    %135 = vector.broadcast %cst_54 : f32 to vector<16x1xf32>
    %136 = arith.divf %134, %135 : vector<16x1xf32>
    %137 = vector.broadcast %136 : vector<16x1xf32> to vector<16x32xf32>
    %138 = arith.subf %132, %137 : vector<16x32xf32>
    %139 = arith.mulf %138, %138 : vector<16x32xf32>
    %cst_55 = arith.constant dense<0.000000e+00> : vector<16xf32>
    %140 = vector.multi_reduction <add>, %139, %cst_55 [1] : vector<16x32xf32> to vector<16xf32>
    %141 = vector.shape_cast %140 : vector<16xf32> to vector<16x1xf32>
    %cst_56 = arith.constant 3.200000e+01 : f32
    %142 = vector.broadcast %cst_56 : f32 to vector<16x1xf32>
    %143 = arith.divf %141, %142 : vector<16x1xf32>
    %144 = vector.broadcast %136 : vector<16x1xf32> to vector<16x32xf32>
    %145 = arith.subf %132, %144 : vector<16x32xf32>
    %cst_57 = arith.constant 9.99999996E-13 : f32
    %146 = vector.broadcast %cst_57 : f32 to vector<16x1xf32>
    %147 = arith.addf %143, %146 : vector<16x1xf32>
    %148 = math.rsqrt %147 : vector<16x1xf32>
    %149 = vector.broadcast %148 : vector<16x1xf32> to vector<16x32xf32>
    %150 = arith.mulf %145, %149 : vector<16x32xf32>
    %151 = vector.broadcast %19 : vector<1x32xf32> to vector<16x32xf32>
    %152 = arith.mulf %150, %151 : vector<16x32xf32>
    %153 = vector.broadcast %20 : vector<1x32xf32> to vector<16x32xf32>
    %154 = arith.addf %152, %153 : vector<16x32xf32>
    %cst_58 = arith.constant dense<0.000000e+00> : vector<16x128xf32>
    %155 = tpu.matmul %154, %6, %cst_58 {dimension_numbers = #tpu.dot_dimension_numbers<[1], [0], [0], [1], [0, 0, 1, 1], [], []>} : vector<16x32xf32>, vector<32x128xf32>, vector<16x128xf32> -> vector<16x128xf32>
    %156 = vector.broadcast %14 : vector<1x128xf32> to vector<16x128xf32>
    %157 = arith.addf %155, %156 : vector<16x128xf32>
    %158 = vector.extract_strided_slice %157 {offsets = [0, 0], sizes = [1, 128], strides = [1, 1]} : vector<16x128xf32> to vector<1x128xf32>
    %c0_59 = arith.constant 0 : index
    %c0_60 = arith.constant 0 : index
    %159 = vector.load %arg4[%c0_59, %c0_60] : memref<2x128xf32, #tpu.memory_space<vmem>>, vector<1x128xf32>
    tpu.vector_store %arg4[%c0_59, %c0_60], %158 {strides = array<i32>} : memref<2x128xf32, #tpu.memory_space<vmem>>, vector<1x128xf32>,
    %160 = vector.extract_strided_slice %157 {offsets = [8, 0], sizes = [1, 128], strides = [1, 1]} : vector<16x128xf32> to vector<1x128xf32>
    %c1_61 = arith.constant 1 : index
    %c0_62 = arith.constant 0 : index
    %161 = vector.load %arg4[%c1_61, %c0_62] : memref<2x128xf32, #tpu.memory_space<vmem>>, vector<1x128xf32>
    tpu.vector_store %arg4[%c1_61, %c0_62], %160 {strides = array<i32>} : memref<2x128xf32, #tpu.memory_space<vmem>>, vector<1x128xf32>,
    return
  }
}

</mosaic_0001>

<llo_original>
// kernel: single_task_forward.1
$region0: #{single_task_forward.1}
  #allocation0 [shape = 'u32[]', space=smem, size = 0x4, offset = 0x4, fixed_abs, tag = 'smem constant byte address 0x4 - core index']
  #allocation1 [shape = 'u32[144,128]{1,0:T(1,128)}', space=vmem, size = 0x12000, scoped, tag = 'internal scratch']
  %s0 = inlined_call_operand.vmem [shape: s32[16,1], index: 0, kind: input, shape index: {}]
  %s1 = inlined_call_operand.vmem [shape: s32[1,16], index: 1, kind: input, shape index: {}]
  %s2 = inlined_call_operand.hbm [shape: f32[312,128], index: 2, kind: input, shape index: {}]
  %s3 = inlined_call_operand.hbm [shape: f32[32,128], index: 3, kind: input, shape index: {}]
  %s4 = inlined_call_operand.hbm [shape: f32[2,128], index: 4, kind: output, shape index: {}]
  %s5 = sld [smem:[#allocation0]]
  $region34: #{single_task_forward.1} parent=0
    _
  %s7 = ssub.s32 1, %s5
  %s8 = scalar_select 0, %s7, %s5
  $region1: #{single_task_forward.1} parent=0
    #allocation2 [shape = 'u8[159744]{0}', space=vmem, size = 0x27000, scoped, tag = 'input window, operand 2, single buffered']
    #allocation3 [shape = 's32[1]{0}', space=sflag, size = 0x4, scoped, tag = 'scoped memory for single_task_forward.1']
    #allocation4 [shape = 's32[1]{0}', space=sflag, size = 0x4, scoped, tag = 'scoped memory for single_task_forward.1']
    #allocation5 [shape = 'u8[16384]{0}', space=vmem, size = 0x4000, scoped, tag = 'input window, operand 3, single buffered']
    #allocation6 [shape = 's32[1]{0}', space=sflag, size = 0x4, scoped, tag = 'scoped memory for single_task_forward.1']
    #allocation7 [shape = 'u8[1024]{0}', space=vmem, size = 0x400, scoped, tag = 'output window, operand 0, single buffered']
    %9 = vsyncpa [#allocation3], 0
    %10 = vsyncpa [#allocation6], 0
    %11 = vsyncpa [#allocation4], 0
    // Predicated region
    $region2: #{single_task_forward.1} parent=1 // pred_check
      _
    $region3: #{single_task_forward.1} parent=1 // pred_check_branch
      %13 = sbr.rel (0) target = $region5
    $region4: #{single_task_forward.1} parent=1 // pred_region
      _
    $region5: #{single_task_forward.1} parent=1 // pred_fallthru
      _
    // Predicated region
    $region6: #{single_task_forward.1} parent=1 // pred_check
      _
    $region7: #{single_task_forward.1} parent=1 // pred_check_branch
      %15 = sbr.rel (0) target = $region9
    $region8: #{single_task_forward.1} parent=1 // pred_region
      _
    $region9: #{single_task_forward.1} parent=1 // pred_fallthru
      _
    // Predicated region
    $region10: #{single_task_forward.1} parent=1 // pred_check
      _
    $region11: #{single_task_forward.1} parent=1 // pred_check_branch
      %17 = sbr.rel (0) target = $region13
    $region12: #{single_task_forward.1} parent=1 // pred_region
      %s19 = ssub.s32 4992, 4992
      %20 = vsyncadd [#allocation3], %s19
      %s21 = sshll.u32 [#allocation2], 4
      %s22 = int_to_ptr.vmem [resolvable:$true] %s21
      %27 = dma.hbm_to_vmem [thread:$0]  %s2, 4992, %s22, [#allocation3], 128, 128, 8
    $region13: #{single_task_forward.1} parent=1 // pred_fallthru
      _
    // Predicated region
    $region14: #{single_task_forward.1} parent=1 // pred_check
      _
    $region15: #{single_task_forward.1} parent=1 // pred_check_branch
      %29 = sbr.rel (0) target = $region17
    $region16: #{single_task_forward.1} parent=1 // pred_region
      %s31 = ssub.s32 512, 512
      %32 = vsyncadd [#allocation6], %s31
      %s33 = sshll.u32 [#allocation5], 4
      %s34 = int_to_ptr.vmem [resolvable:$true] %s33
      %39 = dma.hbm_to_vmem [thread:$0]  %s3, 512, %s34, [#allocation6], 128, 128, 8
    $region17: #{single_task_forward.1} parent=1 // pred_fallthru
      _
    // Predicated region
    $region18: #{single_task_forward.1} parent=1 // pred_check
      _
    $region19: #{single_task_forward.1} parent=1 // pred_check_branch
      %41 = sbr.rel (0) target = $region21
    $region20: #{single_task_forward.1} parent=1 // pred_region
      %42 = dma.done [#allocation3], 4992
    $region21: #{single_task_forward.1} parent=1 // pred_fallthru
      _
    // Predicated region
    $region22: #{single_task_forward.1} parent=1 // pred_check
      _
    $region23: #{single_task_forward.1} parent=1 // pred_check_branch
      %44 = sbr.rel (0) target = $region25
    $region24: #{single_task_forward.1} parent=1 // pred_region
      %45 = dma.done [#allocation6], 512
    $region25: #{single_task_forward.1} parent=1 // pred_fallthru
      _
    %v46 = vld [vmem:[#allocation2] sm:$0xff]
    %v47 = vld [vmem:[#allocation2 + $0x8] sm:$0xff]
    %v48 = vld [vmem:[#allocation2 + $0x10] sm:$0xff]
    %v49 = vld [vmem:[#allocation2 + $0x18] sm:$0xff]
    %v50 = vld [vmem:[#allocation2 + $0x20] sm:$0xff]
    %v51 = vld [vmem:[#allocation2 + $0x28] sm:$0xff]
    %v52 = vld [vmem:[#allocation2 + $0x30] sm:$0xff]
    %v53 = vld [vmem:[#allocation2 + $0x38] sm:$0xff]
    %v54 = vld [vmem:[#allocation2 + $0x40] sm:$0xff]
    %v55 = vld [vmem:[#allocation2 + $0x48] sm:$0xff]
    %v56 = vld [vmem:[#allocation2 + $0x50] sm:$0xff]
    %v57 = vld [vmem:[#allocation2 + $0x58] sm:$0xff]
    %v58 = vld [vmem:[#allocation2 + $0x60] sm:$0xff]
    %v59 = vld [vmem:[#allocation2 + $0x68] sm:$0xff]
    %v60 = vld [vmem:[#allocation2 + $0x70] sm:$0xff]
    %v61 = vld [vmem:[#allocation2 + $0x78] sm:$0xff]
    %v62 = vld [vmem:[#allocation2 + $0x80] sm:$0xff]
    %v63 = vld [vmem:[#allocation2 + $0x88] sm:$0xff]
    %v64 = vld [vmem:[#allocation2 + $0x90] sm:$0xff]
    %v65 = vld [vmem:[#allocation2 + $0x98] sm:$0xff]
    %v66 = vld [vmem:[#allocation2 + $0xa0] sm:$0xff]
    %v67 = vld [vmem:[#allocation2 + $0xa8] sm:$0xff]
    %v68 = vld [vmem:[#allocation2 + $0xb0] sm:$0xff]
    %v69 = vld [vmem:[#allocation2 + $0xb8] sm:$0xff]
    %v70 = vld [vmem:[#allocation2 + $0xc0] sm:$0xff]
    %v71 = vld [vmem:[#allocation2 + $0xc8] sm:$0xff]
    %v72 = vld [vmem:[#allocation2 + $0xd0] sm:$0xff]
    %v73 = vld [vmem:[#allocation2 + $0xd8] sm:$0xff]
    %v74 = vld [vmem:[#allocation2 + $0xe0] sm:$0xff]
    %v75 = vld [vmem:[#allocation2 + $0xe8] sm:$0xff]
    %v76 = vld [vmem:[#allocation2 + $0xf0] sm:$0xff]
    %v77 = vld [vmem:[#allocation2 + $0xf8] sm:$0xff]
    %v78 = vld [vmem:[#allocation2 + $0x100] sm:$0xff]
    %v79 = vld [vmem:[#allocation2 + $0x108] sm:$0xff]
    %v80 = vld [vmem:[#allocation2 + $0x110] sm:$0xff]
    %v81 = vld [vmem:[#allocation2 + $0x118] sm:$0xff]
    %v82 = vld [vmem:[#allocation2 + $0x120] sm:$0xff]
    %v83 = vld [vmem:[#allocation2 + $0x128] sm:$0xff]
    %v84 = vld [vmem:[#allocation2 + $0x130] sm:$0xff]
    %v85 = vld [vmem:[#allocation5] sm:$0x1]
    %v86 = vld [vmem:[#allocation5 + $0x1] sm:$0x1]
    %v87 = vld [vmem:[#allocation5 + $0x2] sm:$0x1]
    %v88 = vld [vmem:[#allocation5 + $0x3] sm:$0x1]
    %v89 = vld [vmem:[#allocation5 + $0x4] sm:$0x1]
    %v90 = vld [vmem:[#allocation5 + $0x5] sm:$0x1]
    %v91 = vld [vmem:[#allocation5 + $0x6] sm:$0x1]
    %v92 = vld [vmem:[#allocation5 + $0x7] sm:$0x1]
    %v93 = vld [vmem:[#allocation5 + $0x8] sm:$0x1]
    %v94 = vld [vmem:[#allocation5 + $0x9] sm:$0x1]
    %v95 = vld [vmem:[#allocation5 + $0xa] sm:$0x1]
    %v96 = vld [vmem:[#allocation5 + $0xb] sm:$0x1]
    %v97 = vld [vmem:[#allocation5 + $0xc] sm:$0x1]
    %v98 = vld [vmem:[#allocation5 + $0x10] sm:$0xff]
    %v99 = vld [vmem:[#allocation5 + $0x18] sm:$0xff]
    %v100 = vld [vmem:[%s0] sm:$0xff]
    %v101 = vld [vmem:[%s0 + $0x8] sm:$0xff]
    %v102 = vlaneseq
    %v103 = vand.u32 %v102, 127
    %104 = vset.pattern.permute.xlu0 0
    %105 = vperm.xlu0 %104, %v100
    %v106 = vpop.permute.xlu0 %105
    %107 = vset.pattern.permute.xlu0 0
    %108 = vperm.xlu0 %107, %v101
    %v109 = vpop.permute.xlu0 %108
    %vm110 = vcmp.eq.s32.totalorder %v103, %v106
    %vm111 = vcmp.eq.s32.totalorder %v103, %v109
    %v112 = vsel %vm110, 1, 0
    %v113 = vsel %vm111, 1, 0
    %v114 = vcvt.s32.f32 %v112
    %v115 = vcvt.s32.f32 %v113
    %vm116 = vcmask 457728
    %v118 = vsel %vm116, %v114, 0
    %v121 = vsel %vm116, %v115, 0
    %123 = vmatprep.subr.mxu0 0.0
    %124 = vmatpush1.msra.mxu0 %v78
    %125 = vmatprep.subr.mxu0 0.0
    %126 = vmatpush1.msra.mxu0 %v79
    %127 = vmatprep.subr.mxu0 0.0
    %128 = vmatpush1.msra.mxu0 %v80
    %129 = vmatprep.subr.mxu0 0.0
    %130 = vmatpush1.msra.mxu0 %v81
    %131 = vmatprep.subr.mxu0 0.0
    %132 = vmatpush1.msra.mxu0 %v82
    %133 = vmatprep.subr.mxu0 0.0
    %134 = vmatpush1.msra.mxu0 %v83
    %135 = vmatprep.subr.mxu0 0.0
    %136 = vmatpush1.msra.mxu0 %v84
    %137 = vmatprep.subr.mxu0 0.0
    %138 = vmatpush1.msra.mxu0 0.0
    %139 = vmatprep.subr.mxu0 0.0
    %140 = vmatpush1.msra.mxu0 0.0
    %141 = vmatprep.subr.mxu0 0.0
    %142 = vmatpush1.msra.mxu0 0.0
    %143 = vmatprep.subr.mxu0 0.0
    %144 = vmatpush1.msra.mxu0 0.0
    %145 = vmatprep.subr.mxu0 0.0
    %146 = vmatpush1.msra.mxu0 0.0
    %147 = vmatprep.subr.mxu0 0.0
    %148 = vmatpush1.msra.mxu0 0.0
    %149 = vmatprep.subr.mxu0 0.0
    %150 = vmatpush1.msra.mxu0 0.0
    %151 = vmatprep.subr.mxu0 0.0
    %152 = vmatpush1.msra.mxu0 0.0
    %153 = vmatprep.subr.mxu0 0.0
    %154 = vmatpush1.msra.mxu0 0.0
    %155 = vmatprep.subr.mxu0 0.0
    %156 = vmatpush1.msra.mxu0 0.0
    %157 = vmatprep.subr.mxu0 0.0
    %158 = vmatpush1.msra.mxu0 0.0
    %159 = vmatprep.subr.mxu0 0.0
    %160 = vmatpush1.msra.mxu0 0.0
    %161 = vmatprep.subr.mxu0 0.0
    %162 = vmatpush1.msra.mxu0 0.0
    %163 = vmatprep.subr.mxu0 0.0
    %164 = vmatpush1.msra.mxu0 0.0
    %165 = vmatprep.subr.mxu0 0.0
    %166 = vmatpush1.msra.mxu0 0.0
    %167 = vmatprep.subr.mxu0 0.0
    %168 = vmatpush1.msra.mxu0 0.0
    %169 = vmatprep.subr.mxu0 0.0
    %170 = vmatpush1.msra.mxu0 0.0
    %171 = vmatprep.subr.mxu0 0.0
    %172 = vmatpush1.msra.mxu0 0.0
    %173 = vmatprep.subr.mxu0 0.0
    %174 = vmatpush1.msra.mxu0 0.0
    %175 = vmatprep.subr.mxu0 0.0
    %176 = vmatpush1.msra.mxu0 0.0
    %177 = vmatprep.subr.mxu0 0.0
    %178 = vmatpush1.msra.mxu0 0.0
    %179 = vmatprep.subr.mxu0 0.0
    %180 = vmatpush1.msra.mxu0 0.0
    %181 = vmatprep.subr.mxu0 0.0
    %182 = vmatpush1.msra.mxu0 0.0
    %183 = vmatprep.subr.mxu0 0.0
    %184 = vmatpush1.msra.mxu0 0.0
    %185 = vmatprep.subr.mxu0 0.0
    %186 = vmatpush1.msra.mxu0 0.0
    %187 = vmatprep.mubr.f32.mxu0 0.0
    %188 = vmatmul.mubr.f32.gmra.mrb[0].mxu0 %v118
    %v189 = vpop.f32.mrb[0].mxu0
    %v190 = vadd.f32 %v98, %v189
    %v191 = vpop.f32.mrb[0].mxu0
    %192 = vmatprep.mubr.f32.mxu0 0.0
    %193 = vmatmul.mubr.f32.gmra.mrb[0].mxu0 %v121
    %v194 = vpop.f32.mrb[0].mxu0
    %v195 = vadd.f32 %v99, %v194
    %v196 = vpop.f32.mrb[0].mxu0
    %197 = vdwg.mxu0
    %vm198 = vcmask 261120
    %v199 = vsel %vm198, %v190, 0.0
    %200 = vadd.xlane.f32.xlu0 %v199
    %v201 = vpop.xlane.xlu0 %200
    %v202 = vsel %vm198, %v195, 0.0
    %203 = vadd.xlane.f32.xlu0 %v202
    %v204 = vpop.xlane.xlu0 %203
    %v205 = vrcp.pop 32.0
    %v206 = vmul.f32 %v201, %v205
    %v207 = vmul.f32 %v204, %v205
    %v208 = vsub.f32 %v190, %v206
    %v209 = vsub.f32 %v195, %v207
    %v210 = vmul.f32 %v208, %v208
    %v211 = vmul.f32 %v209, %v209
    %v212 = vsel %vm198, %v210, 0.0
    %213 = vadd.xlane.f32.xlu0 %v212
    %v214 = vpop.xlane.xlu0 %213
    %v215 = vsel %vm198, %v211, 0.0
    %216 = vadd.xlane.f32.xlu0 %v215
    %v217 = vpop.xlane.xlu0 %216
    %v218 = vmul.f32 %v214, %v205
    %v219 = vmul.f32 %v217, %v205
    %v220 = vadd.f32 %v218, 1e-12
    %v221 = vadd.f32 %v219, 1e-12
    %v222 = vrsqrt.pop %v220
    %v223 = vrsqrt.pop %v221
    %v224 = vmul.f32 %v208, %v222
    %v225 = vmul.f32 %v209, %v223
    %v226 = vlaneseq
    %v227 = vshrl.u32 %v226, 7
    %v228 = vsub.s32 0, %v227
    %v229 = vrot.slane %v92, %v228
    %v230 = vmul.f32 %v224, %v229
    %v231 = vmul.f32 %v225, %v229
    %v232 = vlaneseq
    %v233 = vshrl.u32 %v232, 7
    %v234 = vsub.s32 0, %v233
    %v235 = vrot.slane %v93, %v234
    %v236 = vadd.f32 %v230, %v235
    %v237 = vadd.f32 %v231, %v235
    %v238 = vlaneseq
    %v239 = vshrl.u32 %v238, 7
    %v240 = vsub.s32 0, %v239
    %v241 = vrot.slane %v85, %v240
    %v243 = vsel %vm198, %v236, 0
    %v246 = vsel %vm198, %v237, 0
    %248 = vmatprep.subr.mxu0 0.0
    %249 = vmatpush1.msra.mxu0 %v46
    %250 = vmatprep.subr.mxu0 0.0
    %251 = vmatpush1.msra.mxu0 %v47
    %252 = vmatprep.subr.mxu0 0.0
    %253 = vmatpush1.msra.mxu0 %v48
    %254 = vmatprep.subr.mxu0 0.0
    %255 = vmatpush1.msra.mxu0 %v49
    %256 = vmatprep.subr.mxu0 0.0
    %257 = vmatpush1.msra.mxu0 0.0
    %258 = vmatprep.subr.mxu0 0.0
    %259 = vmatpush1.msra.mxu0 0.0
    %260 = vmatprep.subr.mxu0 0.0
    %261 = vmatpush1.msra.mxu0 0.0
    %262 = vmatprep.subr.mxu0 0.0
    %263 = vmatpush1.msra.mxu0 0.0
    %264 = vmatprep.subr.mxu0 0.0
    %265 = vmatpush1.msra.mxu0 0.0
    %266 = vmatprep.subr.mxu0 0.0
    %267 = vmatpush1.msra.mxu0 0.0
    %268 = vmatprep.subr.mxu0 0.0
    %269 = vmatpush1.msra.mxu0 0.0
    %270 = vmatprep.subr.mxu0 0.0
    %271 = vmatpush1.msra.mxu0 0.0
    %272 = vmatprep.subr.mxu0 0.0
    %273 = vmatpush1.msra.mxu0 0.0
    %274 = vmatprep.subr.mxu0 0.0
    %275 = vmatpush1.msra.mxu0 0.0
    %276 = vmatprep.subr.mxu0 0.0
    %277 = vmatpush1.msra.mxu0 0.0
    %278 = vmatprep.subr.mxu0 0.0
    %279 = vmatpush1.msra.mxu0 0.0
    %280 = vmatprep.subr.mxu0 0.0
    %281 = vmatpush1.msra.mxu0 0.0
    %282 = vmatprep.subr.mxu0 0.0
    %283 = vmatpush1.msra.mxu0 0.0
    %284 = vmatprep.subr.mxu0 0.0
    %285 = vmatpush1.msra.mxu0 0.0
    %286 = vmatprep.subr.mxu0 0.0
    %287 = vmatpush1.msra.mxu0 0.0
    %288 = vmatprep.subr.mxu0 0.0
    %289 = vmatpush1.msra.mxu0 0.0
    %290 = vmatprep.subr.mxu0 0.0
    %291 = vmatpush1.msra.mxu0 0.0
    %292 = vmatprep.subr.mxu0 0.0
    %293 = vmatpush1.msra.mxu0 0.0
    %294 = vmatprep.subr.mxu0 0.0
    %295 = vmatpush1.msra.mxu0 0.0
    %296 = vmatprep.subr.mxu0 0.0
    %297 = vmatpush1.msra.mxu0 0.0
    %298 = vmatprep.subr.mxu0 0.0
    %299 = vmatpush1.msra.mxu0 0.0
    %300 = vmatprep.subr.mxu0 0.0
    %301 = vmatpush1.msra.mxu0 0.0
    %302 = vmatprep.subr.mxu0 0.0
    %303 = vmatpush1.msra.mxu0 0.0
    %304 = vmatprep.subr.mxu0 0.0
    %305 = vmatpush1.msra.mxu0 0.0
    %306 = vmatprep.subr.mxu0 0.0
    %307 = vmatpush1.msra.mxu0 0.0
    %308 = vmatprep.subr.mxu0 0.0
    %309 = vmatpush1.msra.mxu0 0.0
    %310 = vmatprep.subr.mxu0 0.0
    %311 = vmatpush1.msra.mxu0 0.0
    %312 = vmatprep.mubr.f32.mxu0 0.0
    %313 = vmatmul.mubr.f32.gmra.mrb[0].mxu0 %v243
    %v314 = vpop.f32.mrb[0].mxu0
    %v315 = vadd.f32 %v241, %v314
    %v316 = vpop.f32.mrb[0].mxu0
    %317 = vmatprep.mubr.f32.mxu0 0.0
    %318 = vmatmul.mubr.f32.gmra.mrb[0].mxu0 %v246
    %v319 = vpop.f32.mrb[0].mxu0
    %v320 = vadd.f32 %v241, %v319
    %v321 = vpop.f32.mrb[0].mxu0
    %322 = vdwg.mxu0
    %v323 = vlaneseq
    %v324 = vshrl.u32 %v323, 7
    %v325 = vsub.s32 0, %v324
    %v326 = vrot.slane %v86, %v325
    %327 = vmatprep.subr.mxu0 0.0
    %328 = vmatpush1.msra.mxu0 %v50
    %329 = vmatprep.subr.mxu0 0.0
    %330 = vmatpush1.msra.mxu0 %v51
    %331 = vmatprep.subr.mxu0 0.0
    %332 = vmatpush1.msra.mxu0 %v52
    %333 = vmatprep.subr.mxu0 0.0
    %334 = vmatpush1.msra.mxu0 %v53
    %335 = vmatprep.subr.mxu0 0.0
    %336 = vmatpush1.msra.mxu0 0.0
    %337 = vmatprep.subr.mxu0 0.0
    %338 = vmatpush1.msra.mxu0 0.0
    %339 = vmatprep.subr.mxu0 0.0
    %340 = vmatpush1.msra.mxu0 0.0
    %341 = vmatprep.subr.mxu0 0.0
    %342 = vmatpush1.msra.mxu0 0.0
    %343 = vmatprep.subr.mxu0 0.0
    %344 = vmatpush1.msra.mxu0 0.0
    %345 = vmatprep.subr.mxu0 0.0
    %346 = vmatpush1.msra.mxu0 0.0
    %347 = vmatprep.subr.mxu0 0.0
    %348 = vmatpush1.msra.mxu0 0.0
    %349 = vmatprep.subr.mxu0 0.0
    %350 = vmatpush1.msra.mxu0 0.0
    %351 = vmatprep.subr.mxu0 0.0
    %352 = vmatpush1.msra.mxu0 0.0
    %353 = vmatprep.subr.mxu0 0.0
    %354 = vmatpush1.msra.mxu0 0.0
    %355 = vmatprep.subr.mxu0 0.0
    %356 = vmatpush1.msra.mxu0 0.0
    %357 = vmatprep.subr.mxu0 0.0
    %358 = vmatpush1.msra.mxu0 0.0
    %359 = vmatprep.subr.mxu0 0.0
    %360 = vmatpush1.msra.mxu0 0.0
    %361 = vmatprep.subr.mxu0 0.0
    %362 = vmatpush1.msra.mxu0 0.0
    %363 = vmatprep.subr.mxu0 0.0
    %364 = vmatpush1.msra.mxu0 0.0
    %365 = vmatprep.subr.mxu0 0.0
    %366 = vmatpush1.msra.mxu0 0.0
    %367 = vmatprep.subr.mxu0 0.0
    %368 = vmatpush1.msra.mxu0 0.0
    %369 = vmatprep.subr.mxu0 0.0
    %370 = vmatpush1.msra.mxu0 0.0
    %371 = vmatprep.subr.mxu0 0.0
    %372 = vmatpush1.msra.mxu0 0.0
    %373 = vmatprep.subr.mxu0 0.0
    %374 = vmatpush1.msra.mxu0 0.0
    %375 = vmatprep.subr.mxu0 0.0
    %376 = vmatpush1.msra.mxu0 0.0
    %377 = vmatprep.subr.mxu0 0.0
    %378 = vmatpush1.msra.mxu0 0.0
    %379 = vmatprep.subr.mxu0 0.0
    %380 = vmatpush1.msra.mxu0 0.0
    %381 = vmatprep.subr.mxu0 0.0
    %382 = vmatpush1.msra.mxu0 0.0
    %383 = vmatprep.subr.mxu0 0.0
    %384 = vmatpush1.msra.mxu0 0.0
    %385 = vmatprep.subr.mxu0 0.0
    %386 = vmatpush1.msra.mxu0 0.0
    %387 = vmatprep.subr.mxu0 0.0
    %388 = vmatpush1.msra.mxu0 0.0
    %389 = vmatprep.subr.mxu0 0.0
    %390 = vmatpush1.msra.mxu0 0.0
    %391 = vmatprep.mubr.f32.mxu0 0.0
    %392 = vmatmul.mubr.f32.gmra.mrb[0].mxu0 %v243
    %v393 = vpop.f32.mrb[0].mxu0
    %v394 = vadd.f32 %v326, %v393
    %v395 = vpop.f32.mrb[0].mxu0
    %396 = vmatprep.mubr.f32.mxu0 0.0
    %397 = vmatmul.mubr.f32.gmra.mrb[0].mxu0 %v246
    %v398 = vpop.f32.mrb[0].mxu0
    %v399 = vadd.f32 %v326, %v398
    %v400 = vpop.f32.mrb[0].mxu0
    %401 = vdwg.mxu0
    %v402 = vlaneseq
    %v403 = vshrl.u32 %v402, 7
    %v404 = vsub.s32 0, %v403
    %v405 = vrot.slane %v87, %v404
    %406 = vmatprep.subr.mxu0 0.0
    %407 = vmatpush1.msra.mxu0 %v54
    %408 = vmatprep.subr.mxu0 0.0
    %409 = vmatpush1.msra.mxu0 %v55
    %410 = vmatprep.subr.mxu0 0.0
    %411 = vmatpush1.msra.mxu0 %v56
    %412 = vmatprep.subr.mxu0 0.0
    %413 = vmatpush1.msra.mxu0 %v57
    %414 = vmatprep.subr.mxu0 0.0
    %415 = vmatpush1.msra.mxu0 0.0
    %416 = vmatprep.subr.mxu0 0.0
    %417 = vmatpush1.msra.mxu0 0.0
    %418 = vmatprep.subr.mxu0 0.0
    %419 = vmatpush1.msra.mxu0 0.0
    %420 = vmatprep.subr.mxu0 0.0
    %421 = vmatpush1.msra.mxu0 0.0
    %422 = vmatprep.subr.mxu0 0.0
    %423 = vmatpush1.msra.mxu0 0.0
    %424 = vmatprep.subr.mxu0 0.0
    %425 = vmatpush1.msra.mxu0 0.0
    %426 = vmatprep.subr.mxu0 0.0
    %427 = vmatpush1.msra.mxu0 0.0
    %428 = vmatprep.subr.mxu0 0.0
    %429 = vmatpush1.msra.mxu0 0.0
    %430 = vmatprep.subr.mxu0 0.0
    %431 = vmatpush1.msra.mxu0 0.0
    %432 = vmatprep.subr.mxu0 0.0
    %433 = vmatpush1.msra.mxu0 0.0
    %434 = vmatprep.subr.mxu0 0.0
    %435 = vmatpush1.msra.mxu0 0.0
    %436 = vmatprep.subr.mxu0 0.0
    %437 = vmatpush1.msra.mxu0 0.0
    %438 = vmatprep.subr.mxu0 0.0
    %439 = vmatpush1.msra.mxu0 0.0
    %440 = vmatprep.subr.mxu0 0.0
    %441 = vmatpush1.msra.mxu0 0.0
    %442 = vmatprep.subr.mxu0 0.0
    %443 = vmatpush1.msra.mxu0 0.0
    %444 = vmatprep.subr.mxu0 0.0
    %445 = vmatpush1.msra.mxu0 0.0
    %446 = vmatprep.subr.mxu0 0.0
    %447 = vmatpush1.msra.mxu0 0.0
    %448 = vmatprep.subr.mxu0 0.0
    %449 = vmatpush1.msra.mxu0 0.0
    %450 = vmatprep.subr.mxu0 0.0
    %451 = vmatpush1.msra.mxu0 0.0
    %452 = vmatprep.subr.mxu0 0.0
    %453 = vmatpush1.msra.mxu0 0.0
    %454 = vmatprep.subr.mxu0 0.0
    %455 = vmatpush1.msra.mxu0 0.0
    %456 = vmatprep.subr.mxu0 0.0
    %457 = vmatpush1.msra.mxu0 0.0
    %458 = vmatprep.subr.mxu0 0.0
    %459 = vmatpush1.msra.mxu0 0.0
    %460 = vmatprep.subr.mxu0 0.0
    %461 = vmatpush1.msra.mxu0 0.0
    %462 = vmatprep.subr.mxu0 0.0
    %463 = vmatpush1.msra.mxu0 0.0
    %464 = vmatprep.subr.mxu0 0.0
    %465 = vmatpush1.msra.mxu0 0.0
    %466 = vmatprep.subr.mxu0 0.0
    %467 = vmatpush1.msra.mxu0 0.0
    %468 = vmatprep.subr.mxu0 0.0
    %469 = vmatpush1.msra.mxu0 0.0
    %470 = vmatprep.mubr.f32.mxu0 0.0
    %471 = vmatmul.mubr.f32.gmra.mrb[0].mxu0 %v243
    %v472 = vpop.f32.mrb[0].mxu0
    %v473 = vadd.f32 %v405, %v472
    %v474 = vpop.f32.mrb[0].mxu0
    %475 = vmatprep.mubr.f32.mxu0 0.0
    %476 = vmatmul.mubr.f32.gmra.mrb[0].mxu0 %v246
    %v477 = vpop.f32.mrb[0].mxu0
    %v478 = vadd.f32 %v405, %v477
    %v479 = vpop.f32.mrb[0].mxu0
    %480 = vdwg.mxu0
    %v482 = vsel %vm198, %v315, 0
    %v485 = vsel %vm198, %v320, 0
    %v488 = vsel %vm198, %v394, 0
    %v491 = vsel %vm198, %v399, 0
    %493 = vmatprep.subr.mxu0 0.0
    %494 = vmatpush1.xpose.msra.mxu0 %v488
    %495 = vmatprep.subr.mxu0 0.0
    %496 = vmatpush1.xpose.msra.mxu0 %v491
    %497 = vmatprep.subr.mxu0 0.0
    %498 = vmatpush1.xpose.msra.mxu0 0.0
    %499 = vmatprep.subr.mxu0 0.0
    %500 = vmatpush1.xpose.msra.mxu0 0.0
    %501 = vmatprep.subr.mxu0 0.0
    %502 = vmatpush1.xpose.msra.mxu0 0.0
    %503 = vmatprep.subr.mxu0 0.0
    %504 = vmatpush1.xpose.msra.mxu0 0.0
    %505 = vmatprep.subr.mxu0 0.0
    %506 = vmatpush1.xpose.msra.mxu0 0.0
    %507 = vmatprep.subr.mxu0 0.0
    %508 = vmatpush1.xpose.msra.mxu0 0.0
    %509 = vmatprep.subr.mxu0 0.0
    %510 = vmatpush1.xpose.msra.mxu0 0.0
    %511 = vmatprep.subr.mxu0 0.0
    %512 = vmatpush1.xpose.msra.mxu0 0.0
    %513 = vmatprep.subr.mxu0 0.0
    %514 = vmatpush1.xpose.msra.mxu0 0.0
    %515 = vmatprep.subr.mxu0 0.0
    %516 = vmatpush1.xpose.msra.mxu0 0.0
    %517 = vmatprep.subr.mxu0 0.0
    %518 = vmatpush1.xpose.msra.mxu0 0.0
    %519 = vmatprep.subr.mxu0 0.0
    %520 = vmatpush1.xpose.msra.mxu0 0.0
    %521 = vmatprep.subr.mxu0 0.0
    %522 = vmatpush1.xpose.msra.mxu0 0.0
    %523 = vmatprep.subr.mxu0 0.0
    %524 = vmatpush1.xpose.msra.mxu0 0.0
    %525 = vmatprep.subr.mxu0 0.0
    %526 = vmatpush1.xpose.msra.mxu0 0.0
    %527 = vmatprep.subr.mxu0 0.0
    %528 = vmatpush1.xpose.msra.mxu0 0.0
    %529 = vmatprep.subr.mxu0 0.0
    %530 = vmatpush1.xpose.msra.mxu0 0.0
    %531 = vmatprep.subr.mxu0 0.0
    %532 = vmatpush1.xpose.msra.mxu0 0.0
    %533 = vmatprep.subr.mxu0 0.0
    %534 = vmatpush1.xpose.msra.mxu0 0.0
    %535 = vmatprep.subr.mxu0 0.0
    %536 = vmatpush1.xpose.msra.mxu0 0.0
    %537 = vmatprep.subr.mxu0 0.0
    %538 = vmatpush1.xpose.msra.mxu0 0.0
    %539 = vmatprep.subr.mxu0 0.0
    %540 = vmatpush1.xpose.msra.mxu0 0.0
    %541 = vmatprep.subr.mxu0 0.0
    %542 = vmatpush1.xpose.msra.mxu0 0.0
    %543 = vmatprep.subr.mxu0 0.0
    %544 = vmatpush1.xpose.msra.mxu0 0.0
    %545 = vmatprep.subr.mxu0 0.0
    %546 = vmatpush1.xpose.msra.mxu0 0.0
    %547 = vmatprep.subr.mxu0 0.0
    %548 = vmatpush1.xpose.msra.mxu0 0.0
    %549 = vmatprep.subr.mxu0 0.0
    %550 = vmatpush1.xpose.msra.mxu0 0.0
    %551 = vmatprep.subr.mxu0 0.0
    %552 = vmatpush1.xpose.msra.mxu0 0.0
    %553 = vmatprep.subr.mxu0 0.0
    %554 = vmatpush1.xpose.msra.mxu0 0.0
    %555 = vmatprep.subr.mxu0 0.0
    %556 = vmatpush1.xpose.msra.mxu0 0.0
    %557 = vmatprep.mubr.f32.mxu0 0.0
    %558 = vmatmul.mubr.f32.gmra.mrb[0].mxu0 %v482
    %v559 = vpop.f32.mrb[0].mxu0
    %v560 = vadd.f32 0.0, %v559
    %v561 = vpop.f32.mrb[0].mxu0
    %562 = vmatprep.mubr.f32.mxu0 0.0
    %563 = vmatmul.mubr.f32.gmra.mrb[0].mxu0 %v485
    %v564 = vpop.f32.mrb[0].mxu0
    %v565 = vadd.f32 0.0, %v564
    %v566 = vpop.f32.mrb[0].mxu0
    %567 = vdwg.mxu0
    %v568 = vlaneseq
    %v569 = vshrl.u32 %v568, 7
    %v570 = vadd.s32 %v569, 8
    %v571 = vshra.s32 %v569, 3
    %v572 = vshra.s32 %v570, 3
    %v573 = vshra.s32 %v103, 3
    %vm574 = vcmp.eq.s32.totalorder %v571, %v573
    %vm575 = vcmp.eq.s32.totalorder %v572, %v573
    %v576 = vld [vmem:[%s1] sm:$0x1]
    %vm577 = vcmp.gt.s32.totalorder %v576, 0
    %v578 = vsel %vm577, 1, 0
    %v579 = vlaneseq
    %v580 = vshrl.u32 %v579, 7
    %v581 = vsub.s32 0, %v580
    %v582 = vrot.slane %v578, %v581
    %vm583 = vcmp.eq.s32.totalorder %v582, 1
    %vm584 = vmand %vm574, %vm583
    %vm585 = vmand %vm575, %vm583
    %v586 = vsel %vm584, %v560, -1e+09
    %v587 = vsel %vm585, %v565, -1e+09
    %vm588 = vcmask 130048
    %v589 = vsel %vm588, %v586, -inf
    %590 = vmax.xlane.f32.xlu0 %v589
    %v591 = vpop.xlane.xlu0 %590
    %v592 = vsel %vm588, %v587, -inf
    %593 = vmax.xlane.f32.xlu0 %v592
    %v594 = vpop.xlane.xlu0 %593
    %v595 = vsub.f32 %v586, %v591
    %v596 = vsub.f32 %v587, %v594
    %v597 = vmul.f32 %v595, 1.442695
    %v598 = vpow.pop %v597
    %v599 = vmul.f32 %v596, 1.442695
    %v600 = vpow.pop %v599
    %v601 = vsel %vm588, %v598, 0.0
    %602 = vadd.xlane.f32.xlu0 %v601
    %v603 = vpop.xlane.xlu0 %602
    %v604 = vsel %vm588, %v600, 0.0
    %605 = vadd.xlane.f32.xlu0 %v604
    %v606 = vpop.xlane.xlu0 %605
    %v607 = vrcp.pop %v603
    %v608 = vrcp.pop %v606
    %v609 = vmul.f32 %v598, %v607
    %v610 = vmul.f32 %v600, %v608
    %v612 = vsel %vm588, %v609, 0
    %v615 = vsel %vm588, %v610, 0
    %617 = vmatprep.subr.mxu0 0.0
    %618 = vmatpush1.msra.mxu0 %v473
    %619 = vmatprep.subr.mxu0 0.0
    %620 = vmatpush1.msra.mxu0 %v478
    %621 = vmatprep.subr.mxu0 0.0
    %622 = vmatpush1.msra.mxu0 0.0
    %623 = vmatprep.subr.mxu0 0.0
    %624 = vmatpush1.msra.mxu0 0.0
    %625 = vmatprep.subr.mxu0 0.0
    %626 = vmatpush1.msra.mxu0 0.0
    %627 = vmatprep.subr.mxu0 0.0
    %628 = vmatpush1.msra.mxu0 0.0
    %629 = vmatprep.subr.mxu0 0.0
    %630 = vmatpush1.msra.mxu0 0.0
    %631 = vmatprep.subr.mxu0 0.0
    %632 = vmatpush1.msra.mxu0 0.0
    %633 = vmatprep.subr.mxu0 0.0
    %634 = vmatpush1.msra.mxu0 0.0
    %635 = vmatprep.subr.mxu0 0.0
    %636 = vmatpush1.msra.mxu0 0.0
    %637 = vmatprep.subr.mxu0 0.0
    %638 = vmatpush1.msra.mxu0 0.0
    %639 = vmatprep.subr.mxu0 0.0
    %640 = vmatpush1.msra.mxu0 0.0
    %641 = vmatprep.subr.mxu0 0.0
    %642 = vmatpush1.msra.mxu0 0.0
    %643 = vmatprep.subr.mxu0 0.0
    %644 = vmatpush1.msra.mxu0 0.0
    %645 = vmatprep.subr.mxu0 0.0
    %646 = vmatpush1.msra.mxu0 0.0
    %647 = vmatprep.subr.mxu0 0.0
    %648 = vmatpush1.msra.mxu0 0.0
    %649 = vmatprep.subr.mxu0 0.0
    %650 = vmatpush1.msra.mxu0 0.0
    %651 = vmatprep.subr.mxu0 0.0
    %652 = vmatpush1.msra.mxu0 0.0
    %653 = vmatprep.subr.mxu0 0.0
    %654 = vmatpush1.msra.mxu0 0.0
    %655 = vmatprep.subr.mxu0 0.0
    %656 = vmatpush1.msra.mxu0 0.0
    %657 = vmatprep.subr.mxu0 0.0
    %658 = vmatpush1.msra.mxu0 0.0
    %659 = vmatprep.subr.mxu0 0.0
    %660 = vmatpush1.msra.mxu0 0.0
    %661 = vmatprep.subr.mxu0 0.0
    %662 = vmatpush1.msra.mxu0 0.0
    %663 = vmatprep.subr.mxu0 0.0
    %664 = vmatpush1.msra.mxu0 0.0
    %665 = vmatprep.subr.mxu0 0.0
    %666 = vmatpush1.msra.mxu0 0.0
    %667 = vmatprep.subr.mxu0 0.0
    %668 = vmatpush1.msra.mxu0 0.0
    %669 = vmatprep.subr.mxu0 0.0
    %670 = vmatpush1.msra.mxu0 0.0
    %671 = vmatprep.subr.mxu0 0.0
    %672 = vmatpush1.msra.mxu0 0.0
    %673 = vmatprep.subr.mxu0 0.0
    %674 = vmatpush1.msra.mxu0 0.0
    %675 = vmatprep.subr.mxu0 0.0
    %676 = vmatpush1.msra.mxu0 0.0
    %677 = vmatprep.subr.mxu0 0.0
    %678 = vmatpush1.msra.mxu0 0.0
    %679 = vmatprep.subr.mxu0 0.0
    %680 = vmatpush1.msra.mxu0 0.0
    %681 = vmatprep.mubr.f32.mxu0 0.0
    %682 = vmatmul.mubr.f32.gmra.mrb[0].mxu0 %v612
    %v683 = vpop.f32.mrb[0].mxu0
    %v684 = vadd.f32 0.0, %v683
    %v685 = vpop.f32.mrb[0].mxu0
    %686 = vmatprep.mubr.f32.mxu0 0.0
    %687 = vmatmul.mubr.f32.gmra.mrb[0].mxu0 %v615
    %v688 = vpop.f32.mrb[0].mxu0
    %v689 = vadd.f32 0.0, %v688
    %v690 = vpop.f32.mrb[0].mxu0
    %691 = vdwg.mxu0
    %v692 = vlaneseq
    %v693 = vshrl.u32 %v692, 7
    %v694 = vsub.s32 0, %v693
    %v695 = vrot.slane %v88, %v694
    %v697 = vsel %vm198, %v684, 0
    %v700 = vsel %vm198, %v689, 0
    %702 = vmatprep.subr.mxu0 0.0
    %703 = vmatpush1.msra.mxu0 %v58
    %704 = vmatprep.subr.mxu0 0.0
    %705 = vmatpush1.msra.mxu0 %v59
    %706 = vmatprep.subr.mxu0 0.0
    %707 = vmatpush1.msra.mxu0 %v60
    %708 = vmatprep.subr.mxu0 0.0
    %709 = vmatpush1.msra.mxu0 %v61
    %710 = vmatprep.subr.mxu0 0.0
    %711 = vmatpush1.msra.mxu0 0.0
    %712 = vmatprep.subr.mxu0 0.0
    %713 = vmatpush1.msra.mxu0 0.0
    %714 = vmatprep.subr.mxu0 0.0
    %715 = vmatpush1.msra.mxu0 0.0
    %716 = vmatprep.subr.mxu0 0.0
    %717 = vmatpush1.msra.mxu0 0.0
    %718 = vmatprep.subr.mxu0 0.0
    %719 = vmatpush1.msra.mxu0 0.0
    %720 = vmatprep.subr.mxu0 0.0
    %721 = vmatpush1.msra.mxu0 0.0
    %722 = vmatprep.subr.mxu0 0.0
    %723 = vmatpush1.msra.mxu0 0.0
    %724 = vmatprep.subr.mxu0 0.0
    %725 = vmatpush1.msra.mxu0 0.0
    %726 = vmatprep.subr.mxu0 0.0
    %727 = vmatpush1.msra.mxu0 0.0
    %728 = vmatprep.subr.mxu0 0.0
    %729 = vmatpush1.msra.mxu0 0.0
    %730 = vmatprep.subr.mxu0 0.0
    %731 = vmatpush1.msra.mxu0 0.0
    %732 = vmatprep.subr.mxu0 0.0
    %733 = vmatpush1.msra.mxu0 0.0
    %734 = vmatprep.subr.mxu0 0.0
    %735 = vmatpush1.msra.mxu0 0.0
    %736 = vmatprep.subr.mxu0 0.0
    %737 = vmatpush1.msra.mxu0 0.0
    %738 = vmatprep.subr.mxu0 0.0
    %739 = vmatpush1.msra.mxu0 0.0
    %740 = vmatprep.subr.mxu0 0.0
    %741 = vmatpush1.msra.mxu0 0.0
    %742 = vmatprep.subr.mxu0 0.0
    %743 = vmatpush1.msra.mxu0 0.0
    %744 = vmatprep.subr.mxu0 0.0
    %745 = vmatpush1.msra.mxu0 0.0
    %746 = vmatprep.subr.mxu0 0.0
    %747 = vmatpush1.msra.mxu0 0.0
    %748 = vmatprep.subr.mxu0 0.0
    %749 = vmatpush1.msra.mxu0 0.0
    %750 = vmatprep.subr.mxu0 0.0
    %751 = vmatpush1.msra.mxu0 0.0
    %752 = vmatprep.subr.mxu0 0.0
    %753 = vmatpush1.msra.mxu0 0.0
    %754 = vmatprep.subr.mxu0 0.0
    %755 = vmatpush1.msra.mxu0 0.0
    %756 = vmatprep.subr.mxu0 0.0
    %757 = vmatpush1.msra.mxu0 0.0
    %758 = vmatprep.subr.mxu0 0.0
    %759 = vmatpush1.msra.mxu0 0.0
    %760 = vmatprep.subr.mxu0 0.0
    %761 = vmatpush1.msra.mxu0 0.0
    %762 = vmatprep.subr.mxu0 0.0
    %763 = vmatpush1.msra.mxu0 0.0
    %764 = vmatprep.subr.mxu0 0.0
    %765 = vmatpush1.msra.mxu0 0.0
    %766 = vmatprep.mubr.f32.mxu0 0.0
    %767 = vmatmul.mubr.f32.gmra.mrb[0].mxu0 %v697
    %v768 = vpop.f32.mrb[0].mxu0
    %v769 = vadd.f32 %v695, %v768
    %v770 = vpop.f32.mrb[0].mxu0
    %771 = vmatprep.mubr.f32.mxu0 0.0
    %772 = vmatmul.mubr.f32.gmra.mrb[0].mxu0 %v700
    %v773 = vpop.f32.mrb[0].mxu0
    %v774 = vadd.f32 %v695, %v773
    %v775 = vpop.f32.mrb[0].mxu0
    %776 = vdwg.mxu0
    %v777 = vadd.f32 %v236, %v769
    %v778 = vadd.f32 %v237, %v774
    %v779 = vsel %vm198, %v777, 0.0
    %780 = vadd.xlane.f32.xlu0 %v779
    %v781 = vpop.xlane.xlu0 %780
    %v782 = vsel %vm198, %v778, 0.0
    %783 = vadd.xlane.f32.xlu0 %v782
    %v784 = vpop.xlane.xlu0 %783
    %v785 = vmul.f32 %v781, %v205
    %v786 = vmul.f32 %v784, %v205
    %v787 = vsub.f32 %v777, %v785
    %v788 = vsub.f32 %v778, %v786
    %v789 = vmul.f32 %v787, %v787
    %v790 = vmul.f32 %v788, %v788
    %v791 = vsel %vm198, %v789, 0.0
    %792 = vadd.xlane.f32.xlu0 %v791
    %v793 = vpop.xlane.xlu0 %792
    %v794 = vsel %vm198, %v790, 0.0
    %795 = vadd.xlane.f32.xlu0 %v794
    %v796 = vpop.xlane.xlu0 %795
    %v797 = vmul.f32 %v793, %v205
    %v798 = vmul.f32 %v796, %v205
    %v799 = vadd.f32 %v797, 1e-12
    %v800 = vadd.f32 %v798, 1e-12
    %v801 = vrsqrt.pop %v799
    %v802 = vrsqrt.pop %v800
    %v803 = vmul.f32 %v787, %v801
    %v804 = vmul.f32 %v788, %v802
    %v805 = vlaneseq
    %v806 = vshrl.u32 %v805, 7
    %v807 = vsub.s32 0, %v806
    %v808 = vrot.slane %v94, %v807
    %v809 = vmul.f32 %v803, %v808
    %v810 = vmul.f32 %v804, %v808
    %v811 = vlaneseq
    %v812 = vshrl.u32 %v811, 7
    %v813 = vsub.s32 0, %v812
    %v814 = vrot.slane %v95, %v813
    %v815 = vadd.f32 %v809, %v814
    %v816 = vadd.f32 %v810, %v814
    %v817 = vlaneseq
    %v818 = vshrl.u32 %v817, 7
    %v819 = vsub.s32 0, %v818
    %v820 = vrot.slane %v89, %v819
    %v822 = vsel %vm198, %v815, 0
    %v825 = vsel %vm198, %v816, 0
    %827 = vmatprep.subr.mxu0 0.0
    %828 = vmatpush1.msra.mxu0 %v62
    %829 = vmatprep.subr.mxu0 0.0
    %830 = vmatpush1.msra.mxu0 %v63
    %831 = vmatprep.subr.mxu0 0.0
    %832 = vmatpush1.msra.mxu0 %v64
    %833 = vmatprep.subr.mxu0 0.0
    %834 = vmatpush1.msra.mxu0 %v65
    %835 = vmatprep.subr.mxu0 0.0
    %836 = vmatpush1.msra.mxu0 0.0
    %837 = vmatprep.subr.mxu0 0.0
    %838 = vmatpush1.msra.mxu0 0.0
    %839 = vmatprep.subr.mxu0 0.0
    %840 = vmatpush1.msra.mxu0 0.0
    %841 = vmatprep.subr.mxu0 0.0
    %842 = vmatpush1.msra.mxu0 0.0
    %843 = vmatprep.subr.mxu0 0.0
    %844 = vmatpush1.msra.mxu0 0.0
    %845 = vmatprep.subr.mxu0 0.0
    %846 = vmatpush1.msra.mxu0 0.0
    %847 = vmatprep.subr.mxu0 0.0
    %848 = vmatpush1.msra.mxu0 0.0
    %849 = vmatprep.subr.mxu0 0.0
    %850 = vmatpush1.msra.mxu0 0.0
    %851 = vmatprep.subr.mxu0 0.0
    %852 = vmatpush1.msra.mxu0 0.0
    %853 = vmatprep.subr.mxu0 0.0
    %854 = vmatpush1.msra.mxu0 0.0
    %855 = vmatprep.subr.mxu0 0.0
    %856 = vmatpush1.msra.mxu0 0.0
    %857 = vmatprep.subr.mxu0 0.0
    %858 = vmatpush1.msra.mxu0 0.0
    %859 = vmatprep.subr.mxu0 0.0
    %860 = vmatpush1.msra.mxu0 0.0
    %861 = vmatprep.subr.mxu0 0.0
    %862 = vmatpush1.msra.mxu0 0.0
    %863 = vmatprep.subr.mxu0 0.0
    %864 = vmatpush1.msra.mxu0 0.0
    %865 = vmatprep.subr.mxu0 0.0
    %866 = vmatpush1.msra.mxu0 0.0
    %867 = vmatprep.subr.mxu0 0.0
    %868 = vmatpush1.msra.mxu0 0.0
    %869 = vmatprep.subr.mxu0 0.0
    %870 = vmatpush1.msra.mxu0 0.0
    %871 = vmatprep.subr.mxu0 0.0
    %872 = vmatpush1.msra.mxu0 0.0
    %873 = vmatprep.subr.mxu0 0.0
    %874 = vmatpush1.msra.mxu0 0.0
    %875 = vmatprep.subr.mxu0 0.0
    %876 = vmatpush1.msra.mxu0 0.0
    %877 = vmatprep.subr.mxu0 0.0
    %878 = vmatpush1.msra.mxu0 0.0
    %879 = vmatprep.subr.mxu0 0.0
    %880 = vmatpush1.msra.mxu0 0.0
    %881 = vmatprep.subr.mxu0 0.0
    %882 = vmatpush1.msra.mxu0 0.0
    %883 = vmatprep.subr.mxu0 0.0
    %884 = vmatpush1.msra.mxu0 0.0
    %885 = vmatprep.subr.mxu0 0.0
    %886 = vmatpush1.msra.mxu0 0.0
    %887 = vmatprep.subr.mxu0 0.0
    %888 = vmatpush1.msra.mxu0 0.0
    %889 = vmatprep.subr.mxu0 0.0
    %890 = vmatpush1.msra.mxu0 0.0
    %891 = vmatprep.mubr.f32.mxu0 0.0
    %892 = vmatmul.mubr.f32.gmra.mrb[0].mxu0 %v822
    %v893 = vpop.f32.mrb[0].mxu0
    %v894 = vadd.f32 %v820, %v893
    %v895 = vpop.f32.mrb[0].mxu0
    %896 = vmatprep.mubr.f32.mxu0 0.0
    %897 = vmatmul.mubr.f32.gmra.mrb[0].mxu0 %v825
    %v898 = vpop.f32.mrb[0].mxu0
    %v899 = vadd.f32 %v820, %v898
    %v900 = vpop.f32.mrb[0].mxu0
    %901 = vdwg.mxu0
    %v902 = vmul.f32 %v894, %v894
    %v903 = vmul.f32 %v899, %v899
    %v904 = vmul.f32 %v894, %v902
    %v905 = vmul.f32 %v899, %v903
    %v906 = vmul.f32 %v904, 0.044715
    %v907 = vmul.f32 %v905, 0.044715
    %v908 = vadd.f32 %v894, %v906
    %v909 = vadd.f32 %v899, %v907
    %v910 = vmul.f32 %v908, 0.7978846
    %v911 = vmul.f32 %v909, 0.7978846
    %v912 = vtanh.pop %v910
    %v913 = vtanh.pop %v911
    %v914 = vadd.f32 %v912, 1.0
    %v915 = vadd.f32 %v913, 1.0
    %v916 = vmul.f32 %v914, 0.5
    %v917 = vmul.f32 %v915, 0.5
    %v918 = vmul.f32 %v894, %v916
    %v919 = vmul.f32 %v899, %v917
    %v920 = vlaneseq
    %v921 = vshrl.u32 %v920, 7
    %v922 = vsub.s32 0, %v921
    %v923 = vrot.slane %v90, %v922
    %vm924 = vcmask 523264
    %v926 = vsel %vm924, %v918, 0
    %v929 = vsel %vm924, %v919, 0
    %931 = vmatprep.subr.mxu0 0.0
    %932 = vmatpush1.msra.mxu0 %v66
    %933 = vmatprep.subr.mxu0 0.0
    %934 = vmatpush1.msra.mxu0 %v67
    %935 = vmatprep.subr.mxu0 0.0
    %936 = vmatpush1.msra.mxu0 %v68
    %937 = vmatprep.subr.mxu0 0.0
    %938 = vmatpush1.msra.mxu0 %v69
    %939 = vmatprep.subr.mxu0 0.0
    %940 = vmatpush1.msra.mxu0 %v70
    %941 = vmatprep.subr.mxu0 0.0
    %942 = vmatpush1.msra.mxu0 %v71
    %943 = vmatprep.subr.mxu0 0.0
    %944 = vmatpush1.msra.mxu0 %v72
    %945 = vmatprep.subr.mxu0 0.0
    %946 = vmatpush1.msra.mxu0 %v73
    %947 = vmatprep.subr.mxu0 0.0
    %948 = vmatpush1.msra.mxu0 0.0
    %949 = vmatprep.subr.mxu0 0.0
    %950 = vmatpush1.msra.mxu0 0.0
    %951 = vmatprep.subr.mxu0 0.0
    %952 = vmatpush1.msra.mxu0 0.0
    %953 = vmatprep.subr.mxu0 0.0
    %954 = vmatpush1.msra.mxu0 0.0
    %955 = vmatprep.subr.mxu0 0.0
    %956 = vmatpush1.msra.mxu0 0.0
    %957 = vmatprep.subr.mxu0 0.0
    %958 = vmatpush1.msra.mxu0 0.0
    %959 = vmatprep.subr.mxu0 0.0
    %960 = vmatpush1.msra.mxu0 0.0
    %961 = vmatprep.subr.mxu0 0.0
    %962 = vmatpush1.msra.mxu0 0.0
    %963 = vmatprep.subr.mxu0 0.0
    %964 = vmatpush1.msra.mxu0 0.0
    %965 = vmatprep.subr.mxu0 0.0
    %966 = vmatpush1.msra.mxu0 0.0
    %967 = vmatprep.subr.mxu0 0.0
    %968 = vmatpush1.msra.mxu0 0.0
    %969 = vmatprep.subr.mxu0 0.0
    %970 = vmatpush1.msra.mxu0 0.0
    %971 = vmatprep.subr.mxu0 0.0
    %972 = vmatpush1.msra.mxu0 0.0
    %973 = vmatprep.subr.mxu0 0.0
    %974 = vmatpush1.msra.mxu0 0.0
    %975 = vmatprep.subr.mxu0 0.0
    %976 = vmatpush1.msra.mxu0 0.0
    %977 = vmatprep.subr.mxu0 0.0
    %978 = vmatpush1.msra.mxu0 0.0
    %979 = vmatprep.subr.mxu0 0.0
    %980 = vmatpush1.msra.mxu0 0.0
    %981 = vmatprep.subr.mxu0 0.0
    %982 = vmatpush1.msra.mxu0 0.0
    %983 = vmatprep.subr.mxu0 0.0
    %984 = vmatpush1.msra.mxu0 0.0
    %985 = vmatprep.subr.mxu0 0.0
    %986 = vmatpush1.msra.mxu0 0.0
    %987 = vmatprep.subr.mxu0 0.0
    %988 = vmatpush1.msra.mxu0 0.0
    %989 = vmatprep.subr.mxu0 0.0
    %990 = vmatpush1.msra.mxu0 0.0
    %991 = vmatprep.subr.mxu0 0.0
    %992 = vmatpush1.msra.mxu0 0.0
    %993 = vmatprep.subr.mxu0 0.0
    %994 = vmatpush1.msra.mxu0 0.0
    %995 = vmatprep.mubr.f32.mxu0 0.0
    %996 = vmatmul.mubr.f32.gmra.mrb[0].mxu0 %v926
    %v997 = vpop.f32.mrb[0].mxu0
    %v998 = vadd.f32 %v923, %v997
    %v999 = vpop.f32.mrb[0].mxu0
    %1000 = vmatprep.mubr.f32.mxu0 0.0
    %1001 = vmatmul.mubr.f32.gmra.mrb[0].mxu0 %v929
    %v1002 = vpop.f32.mrb[0].mxu0
    %v1003 = vadd.f32 %v923, %v1002
    %v1004 = vpop.f32.mrb[0].mxu0
    %1005 = vdwg.mxu0
    %v1006 = vadd.f32 %v815, %v998
    %v1007 = vadd.f32 %v816, %v1003
    %v1008 = vsel %vm198, %v1006, 0.0
    %1009 = vadd.xlane.f32.xlu0 %v1008
    %v1010 = vpop.xlane.xlu0 %1009
    %v1011 = vsel %vm198, %v1007, 0.0
    %1012 = vadd.xlane.f32.xlu0 %v1011
    %v1013 = vpop.xlane.xlu0 %1012
    %v1014 = vmul.f32 %v1010, %v205
    %v1015 = vmul.f32 %v1013, %v205
    %v1016 = vsub.f32 %v1006, %v1014
    %v1017 = vsub.f32 %v1007, %v1015
    %v1018 = vmul.f32 %v1016, %v1016
    %v1019 = vmul.f32 %v1017, %v1017
    %v1020 = vsel %vm198, %v1018, 0.0
    %1021 = vadd.xlane.f32.xlu0 %v1020
    %v1022 = vpop.xlane.xlu0 %1021
    %v1023 = vsel %vm198, %v1019, 0.0
    %1024 = vadd.xlane.f32.xlu0 %v1023
    %v1025 = vpop.xlane.xlu0 %1024
    %v1026 = vmul.f32 %v1022, %v205
    %v1027 = vmul.f32 %v1025, %v205
    %v1028 = vadd.f32 %v1026, 1e-12
    %v1029 = vadd.f32 %v1027, 1e-12
    %v1030 = vrsqrt.pop %v1028
    %v1031 = vrsqrt.pop %v1029
    %v1032 = vmul.f32 %v1016, %v1030
    %v1033 = vmul.f32 %v1017, %v1031
    %v1034 = vlaneseq
    %v1035 = vshrl.u32 %v1034, 7
    %v1036 = vsub.s32 0, %v1035
    %v1037 = vrot.slane %v96, %v1036
    %v1038 = vmul.f32 %v1032, %v1037
    %v1039 = vmul.f32 %v1033, %v1037
    %v1040 = vlaneseq
    %v1041 = vshrl.u32 %v1040, 7
    %v1042 = vsub.s32 0, %v1041
    %v1043 = vrot.slane %v97, %v1042
    %v1044 = vadd.f32 %v1038, %v1043
    %v1045 = vadd.f32 %v1039, %v1043
    %v1046 = vlaneseq
    %v1047 = vshrl.u32 %v1046, 7
    %v1048 = vsub.s32 0, %v1047
    %v1049 = vrot.slane %v91, %v1048
    %v1051 = vsel %vm198, %v1044, 0
    %v1054 = vsel %vm198, %v1045, 0
    %1056 = vmatprep.subr.mxu0 0.0
    %1057 = vmatpush1.msra.mxu0 %v74
    %1058 = vmatprep.subr.mxu0 0.0
    %1059 = vmatpush1.msra.mxu0 %v75
    %1060 = vmatprep.subr.mxu0 0.0
    %1061 = vmatpush1.msra.mxu0 %v76
    %1062 = vmatprep.subr.mxu0 0.0
    %1063 = vmatpush1.msra.mxu0 %v77
    %1064 = vmatprep.subr.mxu0 0.0
    %1065 = vmatpush1.msra.mxu0 0.0
    %1066 = vmatprep.subr.mxu0 0.0
    %1067 = vmatpush1.msra.mxu0 0.0
    %1068 = vmatprep.subr.mxu0 0.0
    %1069 = vmatpush1.msra.mxu0 0.0
    %1070 = vmatprep.subr.mxu0 0.0
    %1071 = vmatpush1.msra.mxu0 0.0
    %1072 = vmatprep.subr.mxu0 0.0
    %1073 = vmatpush1.msra.mxu0 0.0
    %1074 = vmatprep.subr.mxu0 0.0
    %1075 = vmatpush1.msra.mxu0 0.0
    %1076 = vmatprep.subr.mxu0 0.0
    %1077 = vmatpush1.msra.mxu0 0.0
    %1078 = vmatprep.subr.mxu0 0.0
    %1079 = vmatpush1.msra.mxu0 0.0
    %1080 = vmatprep.subr.mxu0 0.0
    %1081 = vmatpush1.msra.mxu0 0.0
    %1082 = vmatprep.subr.mxu0 0.0
    %1083 = vmatpush1.msra.mxu0 0.0
    %1084 = vmatprep.subr.mxu0 0.0
    %1085 = vmatpush1.msra.mxu0 0.0
    %1086 = vmatprep.subr.mxu0 0.0
    %1087 = vmatpush1.msra.mxu0 0.0
    %1088 = vmatprep.subr.mxu0 0.0
    %1089 = vmatpush1.msra.mxu0 0.0
    %1090 = vmatprep.subr.mxu0 0.0
    %1091 = vmatpush1.msra.mxu0 0.0
    %1092 = vmatprep.subr.mxu0 0.0
    %1093 = vmatpush1.msra.mxu0 0.0
    %1094 = vmatprep.subr.mxu0 0.0
    %1095 = vmatpush1.msra.mxu0 0.0
    %1096 = vmatprep.subr.mxu0 0.0
    %1097 = vmatpush1.msra.mxu0 0.0
    %1098 = vmatprep.subr.mxu0 0.0
    %1099 = vmatpush1.msra.mxu0 0.0
    %1100 = vmatprep.subr.mxu0 0.0
    %1101 = vmatpush1.msra.mxu0 0.0
    %1102 = vmatprep.subr.mxu0 0.0
    %1103 = vmatpush1.msra.mxu0 0.0
    %1104 = vmatprep.subr.mxu0 0.0
    %1105 = vmatpush1.msra.mxu0 0.0
    %1106 = vmatprep.subr.mxu0 0.0
    %1107 = vmatpush1.msra.mxu0 0.0
    %1108 = vmatprep.subr.mxu0 0.0
    %1109 = vmatpush1.msra.mxu0 0.0
    %1110 = vmatprep.subr.mxu0 0.0
    %1111 = vmatpush1.msra.mxu0 0.0
    %1112 = vmatprep.subr.mxu0 0.0
    %1113 = vmatpush1.msra.mxu0 0.0
    %1114 = vmatprep.subr.mxu0 0.0
    %1115 = vmatpush1.msra.mxu0 0.0
    %1116 = vmatprep.subr.mxu0 0.0
    %1117 = vmatpush1.msra.mxu0 0.0
    %1118 = vmatprep.subr.mxu0 0.0
    %1119 = vmatpush1.msra.mxu0 0.0
    %1120 = vmatprep.mubr.f32.mxu0 0.0
    %1121 = vmatmul.mubr.f32.gmra.mrb[0].mxu0 %v1051
    %v1122 = vpop.f32.mrb[0].mxu0
    %v1123 = vadd.f32 %v1049, %v1122
    %v1124 = vpop.f32.mrb[0].mxu0
    %1125 = vmatprep.mubr.f32.mxu0 0.0
    %1126 = vmatmul.mubr.f32.gmra.mrb[0].mxu0 %v1054
    %v1127 = vpop.f32.mrb[0].mxu0
    %v1128 = vadd.f32 %v1049, %v1127
    %v1129 = vpop.f32.mrb[0].mxu0
    %1130 = vdwg.mxu0
    %1131 = vst [vmem:[#allocation7] sm:$0x1] %v1123
    %1132 = vst [vmem:[#allocation7 + $0x1] sm:$0x1] %v1128
    // Predicated region
    $region26: #{single_task_forward.1} parent=1 // pred_check
      _
    $region27: #{single_task_forward.1} parent=1 // pred_check_branch
      %1134 = sbr.rel (0) target = $region29
    $region28: #{single_task_forward.1} parent=1 // pred_region
      %s1136 = ssub.s32 32, 32
      %1137 = vsyncadd [#allocation4], %s1136
      %s1139 = sshll.u32 [#allocation7], 4
      %s1140 = int_to_ptr.vmem [resolvable:$true] %s1139
      %1142 = dma.vmem_to_hbm [thread:$0]  %s1140, 32, %s4, [#allocation4]
    $region29: #{single_task_forward.1} parent=1 // pred_fallthru
      _
    // Predicated region
    $region30: #{single_task_forward.1} parent=1 // pred_check
      _
    $region31: #{single_task_forward.1} parent=1 // pred_check_branch
      %1144 = sbr.rel (0) target = $region33
    $region32: #{single_task_forward.1} parent=1 // pred_region
      %1145 = dma.done [#allocation4], 32
    $region33: #{single_task_forward.1} parent=1 // pred_fallthru
      _
    %1146 = vsyncpa [#allocation3], 1
    %1147 = vsyncpa [#allocation6], 1
    %1148 = vsyncpa [#allocation4], 1

</llo_original>
